<compile_context>
chip_gen: v6e
topology: v6e:2x2x1
jax: 0.10.0
libtpu: 0.0.40
codegen_flags: <defaults>
</compile_context>

<pallas_src>
import functools

import jax
import jax.numpy as jnp
from jax.experimental import pallas as pl
from jax.experimental.pallas import tpu as pltpu


# ----------------------------------------------------------------------------
# Kernel
# ----------------------------------------------------------------------------
def _layernorm(x, gamma, beta, eps=1e-5):
    # x: (M, C) f32, gamma/beta: (1, C)  -- matches torch.nn.LayerNorm (eps=1e-5)
    mu = jnp.mean(x, axis=-1, keepdims=True)
    var = jnp.mean((x - mu) ** 2, axis=-1, keepdims=True)
    return (x - mu) * jax.lax.rsqrt(var + eps) * gamma + beta


def decoder_block_kernel(
    x_ref,                       # (M, C) with M = batch_tile * T
    ln1_g_ref, ln1_b_ref,        # (1, C)
    wqkv_ref,                    # (C, 3C)  = [Wq | Wk | Wv]
    wproj_ref, bproj_ref,        # (C, C), (1, C)
    ln2_g_ref, ln2_b_ref,        # (1, C)
    w1_ref, b1_ref,              # (C, 4C), (1, 4C)
    w2_ref, b2_ref,              # (4C, C), (1, C)
    out_ref,                     # (M, C)
    *, batch_tile, seq_len, num_heads, head_size,
):
    T, d, nH = seq_len, head_size, num_heads
    C = nH * d
    M = batch_tile * T

    x = x_ref[...].astype(jnp.float32)                               # (M, C)

    # ------------------ multi-head causal self-attention ------------------
    ln1 = _layernorm(x, ln1_g_ref[...], ln1_b_ref[...])
    qkv = jnp.dot(ln1, wqkv_ref[...],
                  preferred_element_type=jnp.float32)                # (M, 3C)

    scale = 1.0 / (float(d) ** 0.5)

    # Causal mask built once and reused for every head.
    row = jax.lax.broadcasted_iota(jnp.int32, (T, T), 0)
    col = jax.lax.broadcasted_iota(jnp.int32, (T, T), 1)
    causal = (col <= row)[None, :, :]                                # (1, T, T)

    # Per-head attention; the full folded batch rides along on the leading
    # axis of every op (only leading-dim reshapes, no lane concatenation).
    attn = jnp.zeros((M, C), jnp.float32)
    for h in range(nH):
        qh = (qkv[:, h * d:(h + 1) * d] * scale).reshape(batch_tile, T, d)
        kh = qkv[:, C + h * d:C + (h + 1) * d].reshape(batch_tile, T, d)
        vh = qkv[:, 2 * C + h * d:2 * C + (h + 1) * d].reshape(batch_tile, T, d)

        s = jnp.einsum('btd,bsd->bts', qh, kh,
                       preferred_element_type=jnp.float32)           # (B', T, T)
        s = jnp.where(causal, s, -jnp.inf)
        p = jax.nn.softmax(s, axis=-1)
        oh = jnp.einsum('bts,bsd->btd', p, vh,
                        preferred_element_type=jnp.float32)          # (B', T, d)

        # proj(concat_h o_h) == sum_h o_h @ Wproj[h*d:(h+1)*d, :]
        attn = attn + jnp.dot(oh.reshape(M, d),
                              wproj_ref[h * d:(h + 1) * d, :],
                              preferred_element_type=jnp.float32)

    x = x + attn + bproj_ref[...]

    # ------------------ position-wise feed-forward ------------------
    ln2 = _layernorm(x, ln2_g_ref[...], ln2_b_ref[...])
    h1 = jnp.dot(ln2, w1_ref[...],
                 preferred_element_type=jnp.float32) + b1_ref[...]
    # exact GELU (torch.nn.GELU default): 0.5*x*(1+erf(x/sqrt(2)))
    h1 = 0.5 * h1 * (1.0 + jax.lax.erf(h1 * 0.7071067811865476))
    ff = jnp.dot(h1, w2_ref[...],
                 preferred_element_type=jnp.float32) + b2_ref[...]

    out_ref[...] = (x + ff).astype(out_ref.dtype)


# ----------------------------------------------------------------------------
# Wrapper
# ----------------------------------------------------------------------------
def decoder_block_forward(x, params, *, num_heads, batch_tile=None):
    B, T, C = x.shape
    assert C % num_heads == 0
    head_size = C // num_heads
    if batch_tile is None:
        # Fold the whole batch into one block (max M, zero grid overhead).
        # On v7x with larger B, pass batch_tile = B // 2 to shard the
        # "parallel" grid axis across both TensorCores.
        batch_tile = B
    assert B % batch_tile == 0
    num_tiles = B // batch_tile
    M = batch_tile * T
    H = 4 * C

    x2d = x.reshape(B * T, C)     # lane-dense (C on lanes), rows = batch*seq

    kern = functools.partial(
        decoder_block_kernel,
        batch_tile=batch_tile, seq_len=T, num_heads=num_heads, head_size=head_size)

    def whole(shape):
        return pl.BlockSpec(shape, lambda i: tuple(0 for _ in shape))

    out2d = pl.pallas_call(
        kern,
        out_shape=jax.ShapeDtypeStruct((B * T, C), x.dtype),
        grid=(num_tiles,),
        in_specs=[
            pl.BlockSpec((M, C), lambda i: (i, 0)),     # activations
            whole((1, C)), whole((1, C)),               # ln1 gamma/beta
            whole((C, 3 * C)),                          # fused Wqkv
            whole((C, C)), whole((1, C)),               # Wproj, bproj
            whole((1, C)), whole((1, C)),               # ln2 gamma/beta
            whole((C, H)), whole((1, H)),               # W1, b1
            whole((H, C)), whole((1, C)),               # W2, b2
        ],
        out_specs=pl.BlockSpec((M, C), lambda i: (i, 0)),
        compiler_params=pltpu.CompilerParams(dimension_semantics=("parallel",)),
    )(
        x2d,
        params["ln1_g"], params["ln1_b"],
        params["wqkv"],
        params["wproj"], params["bproj"],
        params["ln2_g"], params["ln2_b"],
        params["w1"], params["b1"],
        params["w2"], params["b2"],
    )
    return out2d.reshape(B, T, C)


# ----------------------------------------------------------------------------
# Deterministic synthetic parameters (mirrors DecoderBlock.__init__ structure)
# ----------------------------------------------------------------------------
def init_decoder_block_params(key, num_input_features):
    C = num_input_features
    H = 4 * C
    ks = jax.random.split(key, 4)

    def normal(k, shape):
        return 0.02 * jax.random.normal(k, shape, dtype=jnp.float32)

    return {
        "ln1_g": jnp.ones((1, C), jnp.float32),
        "ln1_b": jnp.zeros((1, C), jnp.float32),
        # per-head q/k/v weights concatenated along the output axis, then
        # q|k|v fused along the output axis -> (C, 3C)
        "wqkv": normal(ks[0], (C, 3 * C)),
        "wproj": normal(ks[1], (C, C)),
        "bproj": jnp.zeros((1, C), jnp.float32),
        "ln2_g": jnp.ones((1, C), jnp.float32),
        "ln2_b": jnp.zeros((1, C), jnp.float32),
        "w1": normal(ks[2], (C, H)),
        "b1": jnp.zeros((1, H), jnp.float32),
        "w2": normal(ks[3], (H, C)),
        "b2": jnp.zeros((1, C), jnp.float32),
    }


# ----------------------------------------------------------------------------
# Pure-JAX reference (mirrors the PyTorch DecoderBlock forward, eval mode)
# ----------------------------------------------------------------------------
def decoder_block_reference(x, p, *, num_heads):
    B, T, C = x.shape
    d = C // num_heads

    def ln(z, g, b, eps=1e-5):
        mu = jnp.mean(z, axis=-1, keepdims=True)
        var = jnp.mean((z - mu) ** 2, axis=-1, keepdims=True)
        return (z - mu) * jax.lax.rsqrt(var + eps) * g + b

    h = ln(x, p["ln1_g"], p["ln1_b"])
    qkv = h @ p["wqkv"]
    q, k, v = qkv[..., :C], qkv[..., C:2 * C], qkv[..., 2 * C:]
    q = q.reshape(B, T, num_heads, d).transpose(0, 2, 1, 3)
    k = k.reshape(B, T, num_heads, d).transpose(0, 2, 1, 3)
    v = v.reshape(B, T, num_heads, d).transpose(0, 2, 1, 3)
    s = jnp.einsum('bhtd,bhsd->bhts', q, k) * (float(d) ** -0.5)
    mask = jnp.tril(jnp.ones((T, T), dtype=bool))
    s = jnp.where(mask, s, -jnp.inf)
    w = jax.nn.softmax(s, axis=-1)
    o = jnp.einsum('bhts,bhsd->bhtd', w, v).transpose(0, 2, 1, 3).reshape(B, T, C)
    x = x + o @ p["wproj"] + p["bproj"]
    h2 = ln(x, p["ln2_g"], p["ln2_b"])
    m = h2 @ p["w1"] + p["b1"]
    m = 0.5 * m * (1.0 + jax.lax.erf(m * 0.7071067811865476))
    return x + m @ p["w2"] + p["b2"]


# ----------------------------------------------------------------------------
# Main
# ----------------------------------------------------------------------------
if __name__ == "__main__":
    B, T, C = 2, 8, 32          # batch, block_size (seq), num_input_features
    num_heads = 4

    key = jax.random.PRNGKey(0)
    pkey, xkey = jax.random.split(key)

    params = init_decoder_block_params(pkey, C)
    x = jax.random.normal(xkey, (B, T, C), dtype=jnp.float32)

    out = decoder_block_forward(x, params, num_heads=num_heads)
    out = jax.block_until_ready(out)

    assert out.shape == (B, T, C), out.shape
    assert bool(jnp.all(jnp.isfinite(out)))

    ref = decoder_block_reference(x, params, num_heads=num_heads)
    max_err = float(jnp.max(jnp.abs(out - ref)))
    assert max_err < 1e-4, f"mismatch vs reference: {max_err}"

    print("KERNEL_OK")
</pallas_src>

<mosaic_0001>
module attributes {stable_mosaic.version = 11 : i64} {
  func.func @decoder_block_kernel(%arg0: i32, %arg1: memref<16x32xf32, #tpu.memory_space<vmem>>, %arg2: memref<1x32xf32, #tpu.memory_space<vmem>>, %arg3: memref<1x32xf32, #tpu.memory_space<vmem>>, %arg4: memref<32x96xf32, #tpu.memory_space<vmem>>, %arg5: memref<32x32xf32, #tpu.memory_space<vmem>>, %arg6: memref<1x32xf32, #tpu.memory_space<vmem>>, %arg7: memref<1x32xf32, #tpu.memory_space<vmem>>, %arg8: memref<1x32xf32, #tpu.memory_space<vmem>>, %arg9: memref<32x128xf32, #tpu.memory_space<vmem>>, %arg10: memref<1x128xf32, #tpu.memory_space<vmem>>, %arg11: memref<128x32xf32, #tpu.memory_space<vmem>>, %arg12: memref<1x32xf32, #tpu.memory_space<vmem>>, %arg13: memref<16x32xf32, #tpu.memory_space<vmem>>) attributes {dimension_semantics = [#tpu.dimension_semantics<parallel>], iteration_bounds = array<i64: 1>, scalar_prefetch = 0 : i64, scratch_operands = 0 : i64, tpu.core_type = #tpu.core_type<tc>, window_params = [{transform_indices = @transform_0, window_bounds = array<i64: 16, 32>}, {pipeline_mode = #tpu.pipeline_mode<synchronous>, transform_indices = @transform_1, window_bounds = array<i64: 1, 32>}, {pipeline_mode = #tpu.pipeline_mode<synchronous>, transform_indices = @transform_2, window_bounds = array<i64: 1, 32>}, {pipeline_mode = #tpu.pipeline_mode<synchronous>, transform_indices = @transform_3, window_bounds = array<i64: 32, 96>}, {pipeline_mode = #tpu.pipeline_mode<synchronous>, transform_indices = @transform_4, window_bounds = array<i64: 32, 32>}, {pipeline_mode = #tpu.pipeline_mode<synchronous>, transform_indices = @transform_5, window_bounds = array<i64: 1, 32>}, {pipeline_mode = #tpu.pipeline_mode<synchronous>, transform_indices = @transform_6, window_bounds = array<i64: 1, 32>}, {pipeline_mode = #tpu.pipeline_mode<synchronous>, transform_indices = @transform_7, window_bounds = array<i64: 1, 32>}, {pipeline_mode = #tpu.pipeline_mode<synchronous>, transform_indices = @transform_8, window_bounds = array<i64: 32, 128>}, {pipeline_mode = #tpu.pipeline_mode<synchronous>, transform_indices = @transform_9, window_bounds = array<i64: 1, 128>}, {pipeline_mode = #tpu.pipeline_mode<synchronous>, transform_indices = @transform_10, window_bounds = array<i64: 128, 32>}, {pipeline_mode = #tpu.pipeline_mode<synchronous>, transform_indices = @transform_11, window_bounds = array<i64: 1, 32>}, {transform_indices = @transform_12, window_bounds = array<i64: 16, 32>}]} {
    %c0 = arith.constant 0 : index
    %c0_0 = arith.constant 0 : index
    %0 = vector.load %arg1[%c0, %c0_0] : memref<16x32xf32, #tpu.memory_space<vmem>>, vector<16x32xf32>
    %c0_1 = arith.constant 0 : index
    %c0_2 = arith.constant 0 : index
    %1 = vector.load %arg2[%c0_1, %c0_2] : memref<1x32xf32, #tpu.memory_space<vmem>>, vector<1x32xf32>
    %c0_3 = arith.constant 0 : index
    %c0_4 = arith.constant 0 : index
    %2 = vector.load %arg3[%c0_3, %c0_4] : memref<1x32xf32, #tpu.memory_space<vmem>>, vector<1x32xf32>
    %cst = arith.constant dense<0.000000e+00> : vector<16xf32>
    %3 = vector.multi_reduction <add>, %0, %cst [1] : vector<16x32xf32> to vector<16xf32>
    %4 = vector.shape_cast %3 : vector<16xf32> to vector<16x1xf32>
    %cst_5 = arith.constant 3.200000e+01 : f32
    %5 = vector.broadcast %cst_5 : f32 to vector<16x1xf32>
    %6 = arith.divf %4, %5 : vector<16x1xf32>
    %7 = vector.broadcast %6 : vector<16x1xf32> to vector<16x32xf32>
    %8 = arith.subf %0, %7 : vector<16x32xf32>
    %9 = arith.mulf %8, %8 : vector<16x32xf32>
    %cst_6 = arith.constant dense<0.000000e+00> : vector<16xf32>
    %10 = vector.multi_reduction <add>, %9, %cst_6 [1] : vector<16x32xf32> to vector<16xf32>
    %11 = vector.shape_cast %10 : vector<16xf32> to vector<16x1xf32>
    %cst_7 = arith.constant 3.200000e+01 : f32
    %12 = vector.broadcast %cst_7 : f32 to vector<16x1xf32>
    %13 = arith.divf %11, %12 : vector<16x1xf32>
    %14 = vector.broadcast %6 : vector<16x1xf32> to vector<16x32xf32>
    %15 = arith.subf %0, %14 : vector<16x32xf32>
    %cst_8 = arith.constant 9.99999974E-6 : f32
    %16 = vector.broadcast %cst_8 : f32 to vector<16x1xf32>
    %17 = arith.addf %13, %16 : vector<16x1xf32>
    %18 = math.rsqrt %17 : vector<16x1xf32>
    %19 = vector.broadcast %18 : vector<16x1xf32> to vector<16x32xf32>
    %20 = arith.mulf %15, %19 : vector<16x32xf32>
    %21 = vector.broadcast %1 : vector<1x32xf32> to vector<16x32xf32>
    %22 = arith.mulf %20, %21 : vector<16x32xf32>
    %23 = vector.broadcast %2 : vector<1x32xf32> to vector<16x32xf32>
    %24 = arith.addf %22, %23 : vector<16x32xf32>
    %c0_9 = arith.constant 0 : index
    %c0_10 = arith.constant 0 : index
    %25 = vector.load %arg4[%c0_9, %c0_10] : memref<32x96xf32, #tpu.memory_space<vmem>>, vector<32x96xf32>
    %cst_11 = arith.constant dense<0.000000e+00> : vector<16x96xf32>
    %26 = tpu.matmul %24, %25, %cst_11 {dimension_numbers = #tpu.dot_dimension_numbers<[1], [0], [0], [1], [0, 0, 1, 1], [], []>} : vector<16x32xf32>, vector<32x96xf32>, vector<16x96xf32> -> vector<16x96xf32>
    %27 = tpu.iota {dimensions = array<i32: 0>} : vector<8x8xi32>
    %28 = tpu.iota {dimensions = array<i32: 1>} : vector<8x8xi32>
    %29 = arith.cmpi sle, %28, %27 : vector<8x8xi32>
    %30 = vector.shape_cast %29 : vector<8x8xi1> to vector<1x8x8xi1>
    %cst_12 = arith.constant 0.000000e+00 : f32
    %31 = vector.broadcast %cst_12 : f32 to vector<16x32xf32>
    %32 = vector.extract_strided_slice %26 {offsets = [0, 0], sizes = [16, 8], strides = [1, 1]} : vector<16x96xf32> to vector<16x8xf32>
    %cst_13 = arith.constant 0.353553385 : f32
    %33 = vector.broadcast %cst_13 : f32 to vector<16x8xf32>
    %34 = arith.mulf %32, %33 : vector<16x8xf32>
    %35 = vector.shape_cast %34 : vector<16x8xf32> to vector<2x8x8xf32>
    %36 = vector.extract_strided_slice %26 {offsets = [0, 32], sizes = [16, 8], strides = [1, 1]} : vector<16x96xf32> to vector<16x8xf32>
    %37 = vector.shape_cast %36 : vector<16x8xf32> to vector<2x8x8xf32>
    %38 = vector.extract_strided_slice %26 {offsets = [0, 64], sizes = [16, 8], strides = [1, 1]} : vector<16x96xf32> to vector<16x8xf32>
    %39 = vector.shape_cast %38 : vector<16x8xf32> to vector<2x8x8xf32>
    "tpu.trace_start"() <{level = 10 : i32, message = "btd,bsd->bts"}> : () -> ()
    %cst_14 = arith.constant dense<0.000000e+00> : vector<2x8x8xf32>
    %40 = tpu.matmul %35, %37, %cst_14 {dimension_numbers = #tpu.dot_dimension_numbers<[2], [2], [1], [1], [0, 0, 0, 1, 1, 1], [0], [0]>} : vector<2x8x8xf32>, vector<2x8x8xf32>, vector<2x8x8xf32> -> vector<2x8x8xf32>
    %cst_15 = arith.constant 0xFF800000 : f32
    "tpu.trace_stop"() : () -> ()
    %41 = vector.shape_cast %30 : vector<1x8x8xi1> to vector<1x8x8xi1>
    %42 = vector.broadcast %41 : vector<1x8x8xi1> to vector<2x8x8xi1>
    %43 = vector.broadcast %cst_15 : f32 to vector<2x8x8xf32>
    %44 = arith.select %42, %40, %43 : vector<2x8x8xi1>, vector<2x8x8xf32>
    %cst_16 = arith.constant dense<0xFF800000> : vector<2x8xf32>
    %45 = vector.multi_reduction <maximumf>, %44, %cst_16 [2] : vector<2x8x8xf32> to vector<2x8xf32>
    %cst_17 = arith.constant 0xFF800000 : f32
    %46 = vector.broadcast %cst_17 : f32 to vector<2x8xf32>
    %47 = arith.maximumf %46, %45 : vector<2x8xf32>
    %48 = vector.shape_cast %47 : vector<2x8xf32> to vector<2x8x1xf32>
    %49 = vector.broadcast %48 : vector<2x8x1xf32> to vector<2x8x8xf32>
    %50 = arith.subf %44, %49 : vector<2x8x8xf32>
    %51 = math.exp %50 : vector<2x8x8xf32>
    %cst_18 = arith.constant dense<0.000000e+00> : vector<2x8xf32>
    %52 = vector.multi_reduction <add>, %51, %cst_18 [2] : vector<2x8x8xf32> to vector<2x8xf32>
    %53 = vector.shape_cast %52 : vector<2x8xf32> to vector<2x8x1xf32>
    %54 = vector.broadcast %53 : vector<2x8x1xf32> to vector<2x8x8xf32>
    %55 = arith.divf %51, %54 : vector<2x8x8xf32>
    "tpu.trace_start"() <{level = 10 : i32, message = "bts,bsd->btd"}> : () -> ()
    %cst_19 = arith.constant dense<0.000000e+00> : vector<2x8x8xf32>
    %56 = tpu.matmul %55, %39, %cst_19 {dimension_numbers = #tpu.dot_dimension_numbers<[2], [1], [1], [2], [0, 0, 0, 1, 1, 2], [0], [0]>} : vector<2x8x8xf32>, vector<2x8x8xf32>, vector<2x8x8xf32> -> vector<2x8x8xf32>
    "tpu.trace_stop"() : () -> ()
    %57 = vector.shape_cast %56 : vector<2x8x8xf32> to vector<16x8xf32>
    %c0_20 = arith.constant 0 : index
    %c0_21 = arith.constant 0 : index
    %58 = vector.load %arg5[%c0_20, %c0_21] : memref<32x32xf32, #tpu.memory_space<vmem>>, vector<8x32xf32>
    %cst_22 = arith.constant dense<0.000000e+00> : vector<16x32xf32>
    %59 = tpu.matmul %57, %58, %cst_22 {dimension_numbers = #tpu.dot_dimension_numbers<[1], [0], [0], [1], [0, 0, 1, 1], [], []>} : vector<16x8xf32>, vector<8x32xf32>, vector<16x32xf32> -> vector<16x32xf32>
    %60 = arith.addf %31, %59 : vector<16x32xf32>
    %61 = vector.extract_strided_slice %26 {offsets = [0, 8], sizes = [16, 8], strides = [1, 1]} : vector<16x96xf32> to vector<16x8xf32>
    %cst_23 = arith.constant 0.353553385 : f32
    %62 = vector.broadcast %cst_23 : f32 to vector<16x8xf32>
    %63 = arith.mulf %61, %62 : vector<16x8xf32>
    %64 = vector.shape_cast %63 : vector<16x8xf32> to vector<2x8x8xf32>
    %65 = vector.extract_strided_slice %26 {offsets = [0, 40], sizes = [16, 8], strides = [1, 1]} : vector<16x96xf32> to vector<16x8xf32>
    %66 = vector.shape_cast %65 : vector<16x8xf32> to vector<2x8x8xf32>
    %67 = vector.extract_strided_slice %26 {offsets = [0, 72], sizes = [16, 8], strides = [1, 1]} : vector<16x96xf32> to vector<16x8xf32>
    %68 = vector.shape_cast %67 : vector<16x8xf32> to vector<2x8x8xf32>
    "tpu.trace_start"() <{level = 10 : i32, message = "btd,bsd->bts"}> : () -> ()
    %cst_24 = arith.constant dense<0.000000e+00> : vector<2x8x8xf32>
    %69 = tpu.matmul %64, %66, %cst_24 {dimension_numbers = #tpu.dot_dimension_numbers<[2], [2], [1], [1], [0, 0, 0, 1, 1, 1], [0], [0]>} : vector<2x8x8xf32>, vector<2x8x8xf32>, vector<2x8x8xf32> -> vector<2x8x8xf32>
    %cst_25 = arith.constant 0xFF800000 : f32
    "tpu.trace_stop"() : () -> ()
    %70 = vector.shape_cast %30 : vector<1x8x8xi1> to vector<1x8x8xi1>
    %71 = vector.broadcast %70 : vector<1x8x8xi1> to vector<2x8x8xi1>
    %72 = vector.broadcast %cst_25 : f32 to vector<2x8x8xf32>
    %73 = arith.select %71, %69, %72 : vector<2x8x8xi1>, vector<2x8x8xf32>
    %cst_26 = arith.constant dense<0xFF800000> : vector<2x8xf32>
    %74 = vector.multi_reduction <maximumf>, %73, %cst_26 [2] : vector<2x8x8xf32> to vector<2x8xf32>
    %cst_27 = arith.constant 0xFF800000 : f32
    %75 = vector.broadcast %cst_27 : f32 to vector<2x8xf32>
    %76 = arith.maximumf %75, %74 : vector<2x8xf32>
    %77 = vector.shape_cast %76 : vector<2x8xf32> to vector<2x8x1xf32>
    %78 = vector.broadcast %77 : vector<2x8x1xf32> to vector<2x8x8xf32>
    %79 = arith.subf %73, %78 : vector<2x8x8xf32>
    %80 = math.exp %79 : vector<2x8x8xf32>
    %cst_28 = arith.constant dense<0.000000e+00> : vector<2x8xf32>
    %81 = vector.multi_reduction <add>, %80, %cst_28 [2] : vector<2x8x8xf32> to vector<2x8xf32>
    %82 = vector.shape_cast %81 : vector<2x8xf32> to vector<2x8x1xf32>
    %83 = vector.broadcast %82 : vector<2x8x1xf32> to vector<2x8x8xf32>
    %84 = arith.divf %80, %83 : vector<2x8x8xf32>
    "tpu.trace_start"() <{level = 10 : i32, message = "bts,bsd->btd"}> : () -> ()
    %cst_29 = arith.constant dense<0.000000e+00> : vector<2x8x8xf32>
    %85 = tpu.matmul %84, %68, %cst_29 {dimension_numbers = #tpu.dot_dimension_numbers<[2], [1], [1], [2], [0, 0, 0, 1, 1, 2], [0], [0]>} : vector<2x8x8xf32>, vector<2x8x8xf32>, vector<2x8x8xf32> -> vector<2x8x8xf32>
    "tpu.trace_stop"() : () -> ()
    %86 = vector.shape_cast %85 : vector<2x8x8xf32> to vector<16x8xf32>
    %c8 = arith.constant 8 : index
    %c0_30 = arith.constant 0 : index
    %87 = vector.load %arg5[%c8, %c0_30] : memref<32x32xf32, #tpu.memory_space<vmem>>, vector<8x32xf32>
    %cst_31 = arith.constant dense<0.000000e+00> : vector<16x32xf32>
    %88 = tpu.matmul %86, %87, %cst_31 {dimension_numbers = #tpu.dot_dimension_numbers<[1], [0], [0], [1], [0, 0, 1, 1], [], []>} : vector<16x8xf32>, vector<8x32xf32>, vector<16x32xf32> -> vector<16x32xf32>
    %89 = arith.addf %60, %88 : vector<16x32xf32>
    %90 = vector.extract_strided_slice %26 {offsets = [0, 16], sizes = [16, 8], strides = [1, 1]} : vector<16x96xf32> to vector<16x8xf32>
    %cst_32 = arith.constant 0.353553385 : f32
    %91 = vector.broadcast %cst_32 : f32 to vector<16x8xf32>
    %92 = arith.mulf %90, %91 : vector<16x8xf32>
    %93 = vector.shape_cast %92 : vector<16x8xf32> to vector<2x8x8xf32>
    %94 = vector.extract_strided_slice %26 {offsets = [0, 48], sizes = [16, 8], strides = [1, 1]} : vector<16x96xf32> to vector<16x8xf32>
    %95 = vector.shape_cast %94 : vector<16x8xf32> to vector<2x8x8xf32>
    %96 = vector.extract_strided_slice %26 {offsets = [0, 80], sizes = [16, 8], strides = [1, 1]} : vector<16x96xf32> to vector<16x8xf32>
    %97 = vector.shape_cast %96 : vector<16x8xf32> to vector<2x8x8xf32>
    "tpu.trace_start"() <{level = 10 : i32, message = "btd,bsd->bts"}> : () -> ()
    %cst_33 = arith.constant dense<0.000000e+00> : vector<2x8x8xf32>
    %98 = tpu.matmul %93, %95, %cst_33 {dimension_numbers = #tpu.dot_dimension_numbers<[2], [2], [1], [1], [0, 0, 0, 1, 1, 1], [0], [0]>} : vector<2x8x8xf32>, vector<2x8x8xf32>, vector<2x8x8xf32> -> vector<2x8x8xf32>
    %cst_34 = arith.constant 0xFF800000 : f32
    "tpu.trace_stop"() : () -> ()
    %99 = vector.shape_cast %30 : vector<1x8x8xi1> to vector<1x8x8xi1>
    %100 = vector.broadcast %99 : vector<1x8x8xi1> to vector<2x8x8xi1>
    %101 = vector.broadcast %cst_34 : f32 to vector<2x8x8xf32>
    %102 = arith.select %100, %98, %101 : vector<2x8x8xi1>, vector<2x8x8xf32>
    %cst_35 = arith.constant dense<0xFF800000> : vector<2x8xf32>
    %103 = vector.multi_reduction <maximumf>, %102, %cst_35 [2] : vector<2x8x8xf32> to vector<2x8xf32>
    %cst_36 = arith.constant 0xFF800000 : f32
    %104 = vector.broadcast %cst_36 : f32 to vector<2x8xf32>
    %105 = arith.maximumf %104, %103 : vector<2x8xf32>
    %106 = vector.shape_cast %105 : vector<2x8xf32> to vector<2x8x1xf32>
    %107 = vector.broadcast %106 : vector<2x8x1xf32> to vector<2x8x8xf32>
    %108 = arith.subf %102, %107 : vector<2x8x8xf32>
    %109 = math.exp %108 : vector<2x8x8xf32>
    %cst_37 = arith.constant dense<0.000000e+00> : vector<2x8xf32>
    %110 = vector.multi_reduction <add>, %109, %cst_37 [2] : vector<2x8x8xf32> to vector<2x8xf32>
    %111 = vector.shape_cast %110 : vector<2x8xf32> to vector<2x8x1xf32>
    %112 = vector.broadcast %111 : vector<2x8x1xf32> to vector<2x8x8xf32>
    %113 = arith.divf %109, %112 : vector<2x8x8xf32>
    "tpu.trace_start"() <{level = 10 : i32, message = "bts,bsd->btd"}> : () -> ()
    %cst_38 = arith.constant dense<0.000000e+00> : vector<2x8x8xf32>
    %114 = tpu.matmul %113, %97, %cst_38 {dimension_numbers = #tpu.dot_dimension_numbers<[2], [1], [1], [2], [0, 0, 0, 1, 1, 2], [0], [0]>} : vector<2x8x8xf32>, vector<2x8x8xf32>, vector<2x8x8xf32> -> vector<2x8x8xf32>
    "tpu.trace_stop"() : () -> ()
    %115 = vector.shape_cast %114 : vector<2x8x8xf32> to vector<16x8xf32>
    %c16 = arith.constant 16 : index
    %c0_39 = arith.constant 0 : index
    %116 = vector.load %arg5[%c16, %c0_39] : memref<32x32xf32, #tpu.memory_space<vmem>>, vector<8x32xf32>
    %cst_40 = arith.constant dense<0.000000e+00> : vector<16x32xf32>
    %117 = tpu.matmul %115, %116, %cst_40 {dimension_numbers = #tpu.dot_dimension_numbers<[1], [0], [0], [1], [0, 0, 1, 1], [], []>} : vector<16x8xf32>, vector<8x32xf32>, vector<16x32xf32> -> vector<16x32xf32>
    %118 = arith.addf %89, %117 : vector<16x32xf32>
    %119 = vector.extract_strided_slice %26 {offsets = [0, 24], sizes = [16, 8], strides = [1, 1]} : vector<16x96xf32> to vector<16x8xf32>
    %cst_41 = arith.constant 0.353553385 : f32
    %120 = vector.broadcast %cst_41 : f32 to vector<16x8xf32>
    %121 = arith.mulf %119, %120 : vector<16x8xf32>
    %122 = vector.shape_cast %121 : vector<16x8xf32> to vector<2x8x8xf32>
    %123 = vector.extract_strided_slice %26 {offsets = [0, 56], sizes = [16, 8], strides = [1, 1]} : vector<16x96xf32> to vector<16x8xf32>
    %124 = vector.shape_cast %123 : vector<16x8xf32> to vector<2x8x8xf32>
    %125 = vector.extract_strided_slice %26 {offsets = [0, 88], sizes = [16, 8], strides = [1, 1]} : vector<16x96xf32> to vector<16x8xf32>
    %126 = vector.shape_cast %125 : vector<16x8xf32> to vector<2x8x8xf32>
    "tpu.trace_start"() <{level = 10 : i32, message = "btd,bsd->bts"}> : () -> ()
    %cst_42 = arith.constant dense<0.000000e+00> : vector<2x8x8xf32>
    %127 = tpu.matmul %122, %124, %cst_42 {dimension_numbers = #tpu.dot_dimension_numbers<[2], [2], [1], [1], [0, 0, 0, 1, 1, 1], [0], [0]>} : vector<2x8x8xf32>, vector<2x8x8xf32>, vector<2x8x8xf32> -> vector<2x8x8xf32>
    %cst_43 = arith.constant 0xFF800000 : f32
    "tpu.trace_stop"() : () -> ()
    %128 = vector.shape_cast %30 : vector<1x8x8xi1> to vector<1x8x8xi1>
    %129 = vector.broadcast %128 : vector<1x8x8xi1> to vector<2x8x8xi1>
    %130 = vector.broadcast %cst_43 : f32 to vector<2x8x8xf32>
    %131 = arith.select %129, %127, %130 : vector<2x8x8xi1>, vector<2x8x8xf32>
    %cst_44 = arith.constant dense<0xFF800000> : vector<2x8xf32>
    %132 = vector.multi_reduction <maximumf>, %131, %cst_44 [2] : vector<2x8x8xf32> to vector<2x8xf32>
    %cst_45 = arith.constant 0xFF800000 : f32
    %133 = vector.broadcast %cst_45 : f32 to vector<2x8xf32>
    %134 = arith.maximumf %133, %132 : vector<2x8xf32>
    %135 = vector.shape_cast %134 : vector<2x8xf32> to vector<2x8x1xf32>
    %136 = vector.broadcast %135 : vector<2x8x1xf32> to vector<2x8x8xf32>
    %137 = arith.subf %131, %136 : vector<2x8x8xf32>
    %138 = math.exp %137 : vector<2x8x8xf32>
    %cst_46 = arith.constant dense<0.000000e+00> : vector<2x8xf32>
    %139 = vector.multi_reduction <add>, %138, %cst_46 [2] : vector<2x8x8xf32> to vector<2x8xf32>
    %140 = vector.shape_cast %139 : vector<2x8xf32> to vector<2x8x1xf32>
    %141 = vector.broadcast %140 : vector<2x8x1xf32> to vector<2x8x8xf32>
    %142 = arith.divf %138, %141 : vector<2x8x8xf32>
    "tpu.trace_start"() <{level = 10 : i32, message = "bts,bsd->btd"}> : () -> ()
    %cst_47 = arith.constant dense<0.000000e+00> : vector<2x8x8xf32>
    %143 = tpu.matmul %142, %126, %cst_47 {dimension_numbers = #tpu.dot_dimension_numbers<[2], [1], [1], [2], [0, 0, 0, 1, 1, 2], [0], [0]>} : vector<2x8x8xf32>, vector<2x8x8xf32>, vector<2x8x8xf32> -> vector<2x8x8xf32>
    "tpu.trace_stop"() : () -> ()
    %144 = vector.shape_cast %143 : vector<2x8x8xf32> to vector<16x8xf32>
    %c24 = arith.constant 24 : index
    %c0_48 = arith.constant 0 : index
    %145 = vector.load %arg5[%c24, %c0_48] : memref<32x32xf32, #tpu.memory_space<vmem>>, vector<8x32xf32>
    %cst_49 = arith.constant dense<0.000000e+00> : vector<16x32xf32>
    %146 = tpu.matmul %144, %145, %cst_49 {dimension_numbers = #tpu.dot_dimension_numbers<[1], [0], [0], [1], [0, 0, 1, 1], [], []>} : vector<16x8xf32>, vector<8x32xf32>, vector<16x32xf32> -> vector<16x32xf32>
    %147 = arith.addf %118, %146 : vector<16x32xf32>
    %148 = arith.addf %0, %147 : vector<16x32xf32>
    %c0_50 = arith.constant 0 : index
    %c0_51 = arith.constant 0 : index
    %149 = vector.load %arg6[%c0_50, %c0_51] : memref<1x32xf32, #tpu.memory_space<vmem>>, vector<1x32xf32>
    %150 = vector.broadcast %149 : vector<1x32xf32> to vector<16x32xf32>
    %151 = arith.addf %148, %150 : vector<16x32xf32>
    %c0_52 = arith.constant 0 : index
    %c0_53 = arith.constant 0 : index
    %152 = vector.load %arg7[%c0_52, %c0_53] : memref<1x32xf32, #tpu.memory_space<vmem>>, vector<1x32xf32>
    %c0_54 = arith.constant 0 : index
    %c0_55 = arith.constant 0 : index
    %153 = vector.load %arg8[%c0_54, %c0_55] : memref<1x32xf32, #tpu.memory_space<vmem>>, vector<1x32xf32>
    %cst_56 = arith.constant dense<0.000000e+00> : vector<16xf32>
    %154 = vector.multi_reduction <add>, %151, %cst_56 [1] : vector<16x32xf32> to vector<16xf32>
    %155 = vector.shape_cast %154 : vector<16xf32> to vector<16x1xf32>
    %cst_57 = arith.constant 3.200000e+01 : f32
    %156 = vector.broadcast %cst_57 : f32 to vector<16x1xf32>
    %157 = arith.divf %155, %156 : vector<16x1xf32>
    %158 = vector.broadcast %157 : vector<16x1xf32> to vector<16x32xf32>
    %159 = arith.subf %151, %158 : vector<16x32xf32>
    %160 = arith.mulf %159, %159 : vector<16x32xf32>
    %cst_58 = arith.constant dense<0.000000e+00> : vector<16xf32>
    %161 = vector.multi_reduction <add>, %160, %cst_58 [1] : vector<16x32xf32> to vector<16xf32>
    %162 = vector.shape_cast %161 : vector<16xf32> to vector<16x1xf32>
    %cst_59 = arith.constant 3.200000e+01 : f32
    %163 = vector.broadcast %cst_59 : f32 to vector<16x1xf32>
    %164 = arith.divf %162, %163 : vector<16x1xf32>
    %165 = vector.broadcast %157 : vector<16x1xf32> to vector<16x32xf32>
    %166 = arith.subf %151, %165 : vector<16x32xf32>
    %cst_60 = arith.constant 9.99999974E-6 : f32
    %167 = vector.broadcast %cst_60 : f32 to vector<16x1xf32>
    %168 = arith.addf %164, %167 : vector<16x1xf32>
    %169 = math.rsqrt %168 : vector<16x1xf32>
    %170 = vector.broadcast %169 : vector<16x1xf32> to vector<16x32xf32>
    %171 = arith.mulf %166, %170 : vector<16x32xf32>
    %172 = vector.broadcast %152 : vector<1x32xf32> to vector<16x32xf32>
    %173 = arith.mulf %171, %172 : vector<16x32xf32>
    %174 = vector.broadcast %153 : vector<1x32xf32> to vector<16x32xf32>
    %175 = arith.addf %173, %174 : vector<16x32xf32>
    %c0_61 = arith.constant 0 : index
    %c0_62 = arith.constant 0 : index
    %176 = vector.load %arg9[%c0_61, %c0_62] : memref<32x128xf32, #tpu.memory_space<vmem>>, vector<32x128xf32>
    %cst_63 = arith.constant dense<0.000000e+00> : vector<16x128xf32>
    %177 = tpu.matmul %175, %176, %cst_63 {dimension_numbers = #tpu.dot_dimension_numbers<[1], [0], [0], [1], [0, 0, 1, 1], [], []>} : vector<16x32xf32>, vector<32x128xf32>, vector<16x128xf32> -> vector<16x128xf32>
    %c0_64 = arith.constant 0 : index
    %c0_65 = arith.constant 0 : index
    %178 = vector.load %arg10[%c0_64, %c0_65] : memref<1x128xf32, #tpu.memory_space<vmem>>, vector<1x128xf32>
    %179 = vector.broadcast %178 : vector<1x128xf32> to vector<16x128xf32>
    %180 = arith.addf %177, %179 : vector<16x128xf32>
    %cst_66 = arith.constant 5.000000e-01 : f32
    %181 = vector.broadcast %cst_66 : f32 to vector<16x128xf32>
    %182 = arith.mulf %181, %180 : vector<16x128xf32>
    %cst_67 = arith.constant 0.707106769 : f32
    %183 = vector.broadcast %cst_67 : f32 to vector<16x128xf32>
    %184 = arith.mulf %180, %183 : vector<16x128xf32>
    %185 = math.erf %184 : vector<16x128xf32>
    %cst_68 = arith.constant 1.000000e+00 : f32
    %186 = vector.broadcast %cst_68 : f32 to vector<16x128xf32>
    %187 = arith.addf %186, %185 : vector<16x128xf32>
    %188 = arith.mulf %182, %187 : vector<16x128xf32>
    %c0_69 = arith.constant 0 : index
    %c0_70 = arith.constant 0 : index
    %189 = vector.load %arg11[%c0_69, %c0_70] : memref<128x32xf32, #tpu.memory_space<vmem>>, vector<128x32xf32>
    %cst_71 = arith.constant dense<0.000000e+00> : vector<16x32xf32>
    %190 = tpu.matmul %188, %189, %cst_71 {dimension_numbers = #tpu.dot_dimension_numbers<[1], [0], [0], [1], [0, 0, 1, 1], [], []>} : vector<16x128xf32>, vector<128x32xf32>, vector<16x32xf32> -> vector<16x32xf32>
    %c0_72 = arith.constant 0 : index
    %c0_73 = arith.constant 0 : index
    %191 = vector.load %arg12[%c0_72, %c0_73] : memref<1x32xf32, #tpu.memory_space<vmem>>, vector<1x32xf32>
    %192 = vector.broadcast %191 : vector<1x32xf32> to vector<16x32xf32>
    %193 = arith.addf %190, %192 : vector<16x32xf32>
    %194 = arith.addf %151, %193 : vector<16x32xf32>
    %c0_74 = arith.constant 0 : index
    %c0_75 = arith.constant 0 : index
    %195 = vector.load %arg13[%c0_74, %c0_75] : memref<16x32xf32, #tpu.memory_space<vmem>>, vector<16x32xf32>
    tpu.vector_store %arg13[%c0_74, %c0_75], %194 {strides = array<i32>} : memref<16x32xf32, #tpu.memory_space<vmem>>, vector<16x32xf32>,
    return
  }
  func.func @transform_0(%arg0: i32) -> (i32, i32) {
    %c0_i32 = arith.constant 0 : i32
    %c0_i32_0 = arith.constant 0 : i32
    return %arg0, %c0_i32 : i32, i32
  }
  func.func @transform_1(%arg0: i32) -> (i32, i32) {
    %c0_i32 = arith.constant 0 : i32
    %c0_i32_0 = arith.constant 0 : i32
    %c0_i32_1 = arith.constant 0 : i32
    return %c0_i32, %c0_i32_0 : i32, i32
  }
  func.func @transform_2(%arg0: i32) -> (i32, i32) {
    %c0_i32 = arith.constant 0 : i32
    %c0_i32_0 = arith.constant 0 : i32
    %c0_i32_1 = arith.constant 0 : i32
    return %c0_i32, %c0_i32_0 : i32, i32
  }
  func.func @transform_3(%arg0: i32) -> (i32, i32) {
    %c0_i32 = arith.constant 0 : i32
    %c0_i32_0 = arith.constant 0 : i32
    %c0_i32_1 = arith.constant 0 : i32
    return %c0_i32, %c0_i32_0 : i32, i32
  }
  func.func @transform_4(%arg0: i32) -> (i32, i32) {
    %c0_i32 = arith.constant 0 : i32
    %c0_i32_0 = arith.constant 0 : i32
    %c0_i32_1 = arith.constant 0 : i32
    return %c0_i32, %c0_i32_0 : i32, i32
  }
  func.func @transform_5(%arg0: i32) -> (i32, i32) {
    %c0_i32 = arith.constant 0 : i32
    %c0_i32_0 = arith.constant 0 : i32
    %c0_i32_1 = arith.constant 0 : i32
    return %c0_i32, %c0_i32_0 : i32, i32
  }
  func.func @transform_6(%arg0: i32) -> (i32, i32) {
    %c0_i32 = arith.constant 0 : i32
    %c0_i32_0 = arith.constant 0 : i32
    %c0_i32_1 = arith.constant 0 : i32
    return %c0_i32, %c0_i32_0 : i32, i32
  }
  func.func @transform_7(%arg0: i32) -> (i32, i32) {
    %c0_i32 = arith.constant 0 : i32
    %c0_i32_0 = arith.constant 0 : i32
    %c0_i32_1 = arith.constant 0 : i32
    return %c0_i32, %c0_i32_0 : i32, i32
  }
  func.func @transform_8(%arg0: i32) -> (i32, i32) {
    %c0_i32 = arith.constant 0 : i32
    %c0_i32_0 = arith.constant 0 : i32
    %c0_i32_1 = arith.constant 0 : i32
    return %c0_i32, %c0_i32_0 : i32, i32
  }
  func.func @transform_9(%arg0: i32) -> (i32, i32) {
    %c0_i32 = arith.constant 0 : i32
    %c0_i32_0 = arith.constant 0 : i32
    %c0_i32_1 = arith.constant 0 : i32
    return %c0_i32, %c0_i32_0 : i32, i32
  }
  func.func @transform_10(%arg0: i32) -> (i32, i32) {
    %c0_i32 = arith.constant 0 : i32
    %c0_i32_0 = arith.constant 0 : i32
    %c0_i32_1 = arith.constant 0 : i32
    return %c0_i32, %c0_i32_0 : i32, i32
  }
  func.func @transform_11(%arg0: i32) -> (i32, i32) {
    %c0_i32 = arith.constant 0 : i32
    %c0_i32_0 = arith.constant 0 : i32
    %c0_i32_1 = arith.constant 0 : i32
    return %c0_i32, %c0_i32_0 : i32, i32
  }
  func.func @transform_12(%arg0: i32) -> (i32, i32) {
    %c0_i32 = arith.constant 0 : i32
    %c0_i32_0 = arith.constant 0 : i32
    return %arg0, %c0_i32 : i32, i32
  }
}

</mosaic_0001>

<llo_original>
// kernel: tpu_custom_call.1
$region0: #{tpu_custom_call.1}
  #allocation0 [shape = 'u32[]', space=smem, size = 0x4, offset = 0x4, fixed_abs, tag = 'smem constant byte address 0x4 - core index']
  #allocation1 [shape = 'u32[144,128]{1,0:T(1,128)}', space=vmem, size = 0x12000, scoped, tag = 'internal scratch']
  %s0 = inlined_call_operand.vmem [shape: f32[16,32], index: 0, kind: input, shape index: {}]
  %s1 = inlined_call_operand.vmem [shape: f32[1,32], index: 1, kind: input, shape index: {}]
  %s2 = inlined_call_operand.vmem [shape: f32[1,32], index: 2, kind: input, shape index: {}]
  %s3 = inlined_call_operand.vmem [shape: f32[32,96], index: 3, kind: input, shape index: {}]
  %s4 = inlined_call_operand.vmem [shape: f32[32,32], index: 4, kind: input, shape index: {}]
  %s5 = inlined_call_operand.vmem [shape: f32[1,32], index: 5, kind: input, shape index: {}]
  %s6 = inlined_call_operand.vmem [shape: f32[1,32], index: 6, kind: input, shape index: {}]
  %s7 = inlined_call_operand.vmem [shape: f32[1,32], index: 7, kind: input, shape index: {}]
  %s8 = inlined_call_operand.vmem [shape: f32[32,128], index: 8, kind: input, shape index: {}]
  %s9 = inlined_call_operand.vmem [shape: f32[1,128], index: 9, kind: input, shape index: {}]
  %s10 = inlined_call_operand.vmem [shape: f32[128,32], index: 10, kind: input, shape index: {}]
  %s11 = inlined_call_operand.vmem [shape: f32[1,32], index: 11, kind: input, shape index: {}]
  %s12 = inlined_call_operand.hbm [shape: f32[16,32], index: 12, kind: output, shape index: {}]
  %s13 = sld [smem:[#allocation0]]
  $region58: #{tpu_custom_call.1} parent=0
    _
  %s15 = ssub.s32 1, %s13
  %s16 = scalar_select 0, %s15, %s13
  $region1: #{tpu_custom_call.1} parent=0
    #allocation2 [shape = 'u8[8192]{0}', space=vmem, size = 0x2000, scoped, tag = 'output window, operand 0, single buffered']
    #allocation3 [shape = 's32[1]{0}', space=sflag, size = 0x4, scoped, tag = 'scoped memory for tpu_custom_call.1']
    %17 = vsyncpa [#allocation3], 0
    // Predicated region
    $region2: #{tpu_custom_call.1} parent=1 // pred_check
      _
    $region3: #{tpu_custom_call.1} parent=1 // pred_check_branch
      %19 = sbr.rel (0) target = $region5
    $region4: #{tpu_custom_call.1} parent=1 // pred_region
      _
    $region5: #{tpu_custom_call.1} parent=1 // pred_fallthru
      _
    // Predicated region
    $region6: #{tpu_custom_call.1} parent=1 // pred_check
      _
    $region7: #{tpu_custom_call.1} parent=1 // pred_check_branch
      %21 = sbr.rel (0) target = $region9
    $region8: #{tpu_custom_call.1} parent=1 // pred_region
      _
    $region9: #{tpu_custom_call.1} parent=1 // pred_fallthru
      _
    // Predicated region
    $region10: #{tpu_custom_call.1} parent=1 // pred_check
      _
    $region11: #{tpu_custom_call.1} parent=1 // pred_check_branch
      %23 = sbr.rel (0) target = $region13
    $region12: #{tpu_custom_call.1} parent=1 // pred_region
      _
    $region13: #{tpu_custom_call.1} parent=1 // pred_fallthru
      _
    // Predicated region
    $region14: #{tpu_custom_call.1} parent=1 // pred_check
      _
    $region15: #{tpu_custom_call.1} parent=1 // pred_check_branch
      %25 = sbr.rel (0) target = $region17
    $region16: #{tpu_custom_call.1} parent=1 // pred_region
      _
    $region17: #{tpu_custom_call.1} parent=1 // pred_fallthru
      _
    // Predicated region
    $region18: #{tpu_custom_call.1} parent=1 // pred_check
      _
    $region19: #{tpu_custom_call.1} parent=1 // pred_check_branch
      %27 = sbr.rel (0) target = $region21
    $region20: #{tpu_custom_call.1} parent=1 // pred_region
      _
    $region21: #{tpu_custom_call.1} parent=1 // pred_fallthru
      _
    // Predicated region
    $region22: #{tpu_custom_call.1} parent=1 // pred_check
      _
    $region23: #{tpu_custom_call.1} parent=1 // pred_check_branch
      %29 = sbr.rel (0) target = $region25
    $region24: #{tpu_custom_call.1} parent=1 // pred_region
      _
    $region25: #{tpu_custom_call.1} parent=1 // pred_fallthru
      _
    // Predicated region
    $region26: #{tpu_custom_call.1} parent=1 // pred_check
      _
    $region27: #{tpu_custom_call.1} parent=1 // pred_check_branch
      %31 = sbr.rel (0) target = $region29
    $region28: #{tpu_custom_call.1} parent=1 // pred_region
      _
    $region29: #{tpu_custom_call.1} parent=1 // pred_fallthru
      _
    // Predicated region
    $region30: #{tpu_custom_call.1} parent=1 // pred_check
      _
    $region31: #{tpu_custom_call.1} parent=1 // pred_check_branch
      %33 = sbr.rel (0) target = $region33
    $region32: #{tpu_custom_call.1} parent=1 // pred_region
      _
    $region33: #{tpu_custom_call.1} parent=1 // pred_fallthru
      _
    // Predicated region
    $region34: #{tpu_custom_call.1} parent=1 // pred_check
      _
    $region35: #{tpu_custom_call.1} parent=1 // pred_check_branch
      %35 = sbr.rel (0) target = $region37
    $region36: #{tpu_custom_call.1} parent=1 // pred_region
      _
    $region37: #{tpu_custom_call.1} parent=1 // pred_fallthru
      _
    // Predicated region
    $region38: #{tpu_custom_call.1} parent=1 // pred_check
      _
    $region39: #{tpu_custom_call.1} parent=1 // pred_check_branch
      %37 = sbr.rel (0) target = $region41
    $region40: #{tpu_custom_call.1} parent=1 // pred_region
      _
    $region41: #{tpu_custom_call.1} parent=1 // pred_fallthru
      _
    // Predicated region
    $region42: #{tpu_custom_call.1} parent=1 // pred_check
      _
    $region43: #{tpu_custom_call.1} parent=1 // pred_check_branch
      %39 = sbr.rel (0) target = $region45
    $region44: #{tpu_custom_call.1} parent=1 // pred_region
      _
    $region45: #{tpu_custom_call.1} parent=1 // pred_fallthru
      _
    // Predicated region
    $region46: #{tpu_custom_call.1} parent=1 // pred_check
      _
    $region47: #{tpu_custom_call.1} parent=1 // pred_check_branch
      %41 = sbr.rel (0) target = $region49
    $region48: #{tpu_custom_call.1} parent=1 // pred_region
      _
    $region49: #{tpu_custom_call.1} parent=1 // pred_fallthru
      _
    %v42 = vld [vmem:[%s0] sm:$0xff]
    %v43 = vld [vmem:[%s0 + $0x8] sm:$0xff]
    %v44 = vld [vmem:[%s1] sm:$0x1]
    %v45 = vld [vmem:[%s2] sm:$0x1]
    %vm46 = vcmask 261120
    %v47 = vsel %vm46, %v42, 0.0
    %48 = vadd.xlane.f32.xlu0 %v47
    %v49 = vpop.xlane.xlu0 %48
    %v50 = vsel %vm46, %v43, 0.0
    %51 = vadd.xlane.f32.xlu0 %v50
    %v52 = vpop.xlane.xlu0 %51
    %v53 = vrcp.pop 32.0
    %v54 = vmul.f32 %v49, %v53
    %v55 = vmul.f32 %v52, %v53
    %v56 = vsub.f32 %v42, %v54
    %v57 = vsub.f32 %v43, %v55
    %v58 = vmul.f32 %v56, %v56
    %v59 = vmul.f32 %v57, %v57
    %v60 = vsel %vm46, %v58, 0.0
    %61 = vadd.xlane.f32.xlu0 %v60
    %v62 = vpop.xlane.xlu0 %61
    %v63 = vsel %vm46, %v59, 0.0
    %64 = vadd.xlane.f32.xlu0 %v63
    %v65 = vpop.xlane.xlu0 %64
    %v66 = vmul.f32 %v62, %v53
    %v67 = vmul.f32 %v65, %v53
    %v68 = vadd.f32 %v66, 1e-05
    %v69 = vadd.f32 %v67, 1e-05
    %v70 = vrsqrt.pop %v68
    %v71 = vrsqrt.pop %v69
    %v72 = vmul.f32 %v56, %v70
    %v73 = vmul.f32 %v57, %v71
    %v75 = vlaneseq
    %v76 = vshrl.u32 %v75, 7
    %v77 = vsub.s32 0, %v76
    %v78 = vrot.slane %v44, %v77
    %v80 = vmul.f32 %v72, %v78
    %v81 = vmul.f32 %v73, %v78
    %v83 = vlaneseq
    %v84 = vshrl.u32 %v83, 7
    %v85 = vsub.s32 0, %v84
    %v86 = vrot.slane %v45, %v85
    %v88 = vadd.f32 %v80, %v86
    %v89 = vadd.f32 %v81, %v86
    %v90 = vld [vmem:[%s3] sm:$0xff]
    %v91 = vld [vmem:[%s3 + $0x8] sm:$0xff]
    %v92 = vld [vmem:[%s3 + $0x10] sm:$0xff]
    %v93 = vld [vmem:[%s3 + $0x18] sm:$0xff]
    %v95 = vsel %vm46, %v88, 0
    %v98 = vsel %vm46, %v89, 0
    %100 = vmatprep.subr.mxu0 0.0
    %101 = vmatpush1.msra.mxu0 0.0
    %102 = vmatprep.subr.mxu0 0.0
    %103 = vmatpush1.msra.mxu0 0.0
    %104 = vmatprep.subr.mxu0 0.0
    %105 = vmatpush1.msra.mxu0 0.0
    %106 = vmatprep.subr.mxu0 0.0
    %107 = vmatpush1.msra.mxu0 0.0
    %108 = vmatprep.subr.mxu0 0.0
    %109 = vmatpush1.msra.mxu0 0.0
    %110 = vmatprep.subr.mxu0 0.0
    %111 = vmatpush1.msra.mxu0 0.0
    %112 = vmatprep.subr.mxu0 0.0
    %113 = vmatpush1.msra.mxu0 0.0
    %114 = vmatprep.subr.mxu0 0.0
    %115 = vmatpush1.msra.mxu0 0.0
    %116 = vmatprep.subr.mxu0 0.0
    %117 = vmatpush1.msra.mxu0 0.0
    %118 = vmatprep.subr.mxu0 0.0
    %119 = vmatpush1.msra.mxu0 0.0
    %120 = vmatprep.subr.mxu0 0.0
    %121 = vmatpush1.msra.mxu0 0.0
    %122 = vmatprep.subr.mxu0 0.0
    %123 = vmatpush1.msra.mxu0 0.0
    %124 = vmatprep.subr.mxu0 0.0
    %125 = vmatpush1.msra.mxu0 %v93
    %126 = vmatprep.subr.mxu0 0.0
    %127 = vmatpush1.msra.mxu0 %v92
    %128 = vmatprep.subr.mxu0 0.0
    %129 = vmatpush1.msra.mxu0 %v91
    %130 = vmatprep.subr.mxu0 0.0
    %131 = vmatpush1.msra.mxu0 %v90
    %132 = vmatprep.subr.mxu0 0.0
    %133 = vmatpush2.msra.mxu0 0.0
    %134 = vmatprep.subr.mxu0 0.0
    %135 = vmatpush2.msra.mxu0 0.0
    %136 = vmatprep.subr.mxu0 0.0
    %137 = vmatpush2.msra.mxu0 0.0
    %138 = vmatprep.subr.mxu0 0.0
    %139 = vmatpush2.msra.mxu0 0.0
    %140 = vmatprep.subr.mxu0 0.0
    %141 = vmatpush2.msra.mxu0 0.0
    %142 = vmatprep.subr.mxu0 0.0
    %143 = vmatpush2.msra.mxu0 0.0
    %144 = vmatprep.subr.mxu0 0.0
    %145 = vmatpush2.msra.mxu0 0.0
    %146 = vmatprep.subr.mxu0 0.0
    %147 = vmatpush2.msra.mxu0 0.0
    %148 = vmatprep.subr.mxu0 0.0
    %149 = vmatpush2.msra.mxu0 0.0
    %150 = vmatprep.subr.mxu0 0.0
    %151 = vmatpush2.msra.mxu0 0.0
    %152 = vmatprep.subr.mxu0 0.0
    %153 = vmatpush2.msra.mxu0 0.0
    %154 = vmatprep.subr.mxu0 0.0
    %155 = vmatpush2.msra.mxu0 0.0
    %156 = vmatprep.subr.mxu0 0.0
    %157 = vmatpush2.msra.mxu0 0.0
    %158 = vmatprep.subr.mxu0 0.0
    %159 = vmatpush2.msra.mxu0 0.0
    %160 = vmatprep.subr.mxu0 0.0
    %161 = vmatpush2.msra.mxu0 0.0
    %162 = vmatprep.subr.mxu0 0.0
    %163 = vmatpush2.msra.mxu0 0.0
    %164 = vmatprep.mubr.f32.mxu0 0.0
    %165 = vmatmul.mubr.f32.gmra.mxu0 %v95
    %v166 = vpop.f32.mrf.mxu0
    %v167 = vadd.f32 0.0, %v166
    %v168 = vpop.f32.mrf.mxu0
    %169 = vmatprep.mubr.f32.mxu0 0.0
    %170 = vmatmul.mubr.f32.gmra.mxu0 %v98
    %v171 = vpop.f32.mrf.mxu0
    %v172 = vadd.f32 0.0, %v171
    %v173 = vpop.f32.mrf.mxu0
    %174 = vdwg.mxu0
    %v175 = vlaneseq
    %v176 = vshrl.u32 %v175, 7
    %v177 = vlaneseq
    %v178 = vand.u32 %v177, 127
    %vm179 = vcmp.le.s32.totalorder %v178, %v176
    %v180 = vmul.f32 %v167, 0.35355338
    %v181 = vmul.f32 %v172, 0.35355338
    %183 = vrot.lane.b32.xlu0 %v167, 96
    %v184 = vpop.permute.xlu0 %183
    %vm185 = vcmask 64512
    %v187 = vsel %vm185, %v180, 0
    %v189 = vsel %vm185, %v184, 0
    %191 = vmatprep.subr.mxu0 0.0
    %192 = vmatpush1.xpose.msra.mxu0 0.0
    %193 = vmatprep.subr.mxu0 0.0
    %194 = vmatpush1.xpose.msra.mxu0 0.0
    %195 = vmatprep.subr.mxu0 0.0
    %196 = vmatpush1.xpose.msra.mxu0 0.0
    %197 = vmatprep.subr.mxu0 0.0
    %198 = vmatpush1.xpose.msra.mxu0 0.0
    %199 = vmatprep.subr.mxu0 0.0
    %200 = vmatpush1.xpose.msra.mxu0 0.0
    %201 = vmatprep.subr.mxu0 0.0
    %202 = vmatpush1.xpose.msra.mxu0 0.0
    %203 = vmatprep.subr.mxu0 0.0
    %204 = vmatpush1.xpose.msra.mxu0 0.0
    %205 = vmatprep.subr.mxu0 0.0
    %206 = vmatpush1.xpose.msra.mxu0 0.0
    %207 = vmatprep.subr.mxu0 0.0
    %208 = vmatpush1.xpose.msra.mxu0 0.0
    %209 = vmatprep.subr.mxu0 0.0
    %210 = vmatpush1.xpose.msra.mxu0 0.0
    %211 = vmatprep.subr.mxu0 0.0
    %212 = vmatpush1.xpose.msra.mxu0 0.0
    %213 = vmatprep.subr.mxu0 0.0
    %214 = vmatpush1.xpose.msra.mxu0 0.0
    %215 = vmatprep.subr.mxu0 0.0
    %216 = vmatpush1.xpose.msra.mxu0 0.0
    %217 = vmatprep.subr.mxu0 0.0
    %218 = vmatpush1.xpose.msra.mxu0 0.0
    %219 = vmatprep.subr.mxu0 0.0
    %220 = vmatpush1.xpose.msra.mxu0 0.0
    %221 = vmatprep.subr.mxu0 0.0
    %222 = vmatpush1.xpose.msra.mxu0 %v189
    %223 = vmatprep.subr.mxu0 0.0
    %224 = vmatpush2.xpose.msra.mxu0 0.0
    %225 = vmatprep.subr.mxu0 0.0
    %226 = vmatpush2.xpose.msra.mxu0 0.0
    %227 = vmatprep.subr.mxu0 0.0
    %228 = vmatpush2.xpose.msra.mxu0 0.0
    %229 = vmatprep.subr.mxu0 0.0
    %230 = vmatpush2.xpose.msra.mxu0 0.0
    %231 = vmatprep.subr.mxu0 0.0
    %232 = vmatpush2.xpose.msra.mxu0 0.0
    %233 = vmatprep.subr.mxu0 0.0
    %234 = vmatpush2.xpose.msra.mxu0 0.0
    %235 = vmatprep.subr.mxu0 0.0
    %236 = vmatpush2.xpose.msra.mxu0 0.0
    %237 = vmatprep.subr.mxu0 0.0
    %238 = vmatpush2.xpose.msra.mxu0 0.0
    %239 = vmatprep.subr.mxu0 0.0
    %240 = vmatpush2.xpose.msra.mxu0 0.0
    %241 = vmatprep.subr.mxu0 0.0
    %242 = vmatpush2.xpose.msra.mxu0 0.0
    %243 = vmatprep.subr.mxu0 0.0
    %244 = vmatpush2.xpose.msra.mxu0 0.0
    %245 = vmatprep.subr.mxu0 0.0
    %246 = vmatpush2.xpose.msra.mxu0 0.0
    %247 = vmatprep.subr.mxu0 0.0
    %248 = vmatpush2.xpose.msra.mxu0 0.0
    %249 = vmatprep.subr.mxu0 0.0
    %250 = vmatpush2.xpose.msra.mxu0 0.0
    %251 = vmatprep.subr.mxu0 0.0
    %252 = vmatpush2.xpose.msra.mxu0 0.0
    %253 = vmatprep.subr.mxu0 0.0
    %254 = vmatpush2.xpose.msra.mxu0 0.0
    %255 = vmatprep.mubr.f32.mxu0 0.0
    %256 = vmatmul.mubr.f32.gmra.mxu0 %v187
    %v257 = vpop.f32.mrf.mxu0
    %v258 = vadd.f32 0.0, %v257
    %v259 = vpop.f32.mrf.mxu0
    %260 = vdwg.mxu0
    %262 = vrot.lane.b32.xlu0 %v172, 96
    %v263 = vpop.permute.xlu0 %262
    %v265 = vsel %vm185, %v181, 0
    %v267 = vsel %vm185, %v263, 0
    %269 = vmatprep.subr.mxu0 0.0
    %270 = vmatpush1.xpose.msra.mxu0 0.0
    %271 = vmatprep.subr.mxu0 0.0
    %272 = vmatpush1.xpose.msra.mxu0 0.0
    %273 = vmatprep.subr.mxu0 0.0
    %274 = vmatpush1.xpose.msra.mxu0 0.0
    %275 = vmatprep.subr.mxu0 0.0
    %276 = vmatpush1.xpose.msra.mxu0 0.0
    %277 = vmatprep.subr.mxu0 0.0
    %278 = vmatpush1.xpose.msra.mxu0 0.0
    %279 = vmatprep.subr.mxu0 0.0
    %280 = vmatpush1.xpose.msra.mxu0 0.0
    %281 = vmatprep.subr.mxu0 0.0
    %282 = vmatpush1.xpose.msra.mxu0 0.0
    %283 = vmatprep.subr.mxu0 0.0
    %284 = vmatpush1.xpose.msra.mxu0 0.0
    %285 = vmatprep.subr.mxu0 0.0
    %286 = vmatpush1.xpose.msra.mxu0 0.0
    %287 = vmatprep.subr.mxu0 0.0
    %288 = vmatpush1.xpose.msra.mxu0 0.0
    %289 = vmatprep.subr.mxu0 0.0
    %290 = vmatpush1.xpose.msra.mxu0 0.0
    %291 = vmatprep.subr.mxu0 0.0
    %292 = vmatpush1.xpose.msra.mxu0 0.0
    %293 = vmatprep.subr.mxu0 0.0
    %294 = vmatpush1.xpose.msra.mxu0 0.0
    %295 = vmatprep.subr.mxu0 0.0
    %296 = vmatpush1.xpose.msra.mxu0 0.0
    %297 = vmatprep.subr.mxu0 0.0
    %298 = vmatpush1.xpose.msra.mxu0 0.0
    %299 = vmatprep.subr.mxu0 0.0
    %300 = vmatpush1.xpose.msra.mxu0 %v267
    %301 = vmatprep.subr.mxu0 0.0
    %302 = vmatpush2.xpose.msra.mxu0 0.0
    %303 = vmatprep.subr.mxu0 0.0
    %304 = vmatpush2.xpose.msra.mxu0 0.0
    %305 = vmatprep.subr.mxu0 0.0
    %306 = vmatpush2.xpose.msra.mxu0 0.0
    %307 = vmatprep.subr.mxu0 0.0
    %308 = vmatpush2.xpose.msra.mxu0 0.0
    %309 = vmatprep.subr.mxu0 0.0
    %310 = vmatpush2.xpose.msra.mxu0 0.0
    %311 = vmatprep.subr.mxu0 0.0
    %312 = vmatpush2.xpose.msra.mxu0 0.0
    %313 = vmatprep.subr.mxu0 0.0
    %314 = vmatpush2.xpose.msra.mxu0 0.0
    %315 = vmatprep.subr.mxu0 0.0
    %316 = vmatpush2.xpose.msra.mxu0 0.0
    %317 = vmatprep.subr.mxu0 0.0
    %318 = vmatpush2.xpose.msra.mxu0 0.0
    %319 = vmatprep.subr.mxu0 0.0
    %320 = vmatpush2.xpose.msra.mxu0 0.0
    %321 = vmatprep.subr.mxu0 0.0
    %322 = vmatpush2.xpose.msra.mxu0 0.0
    %323 = vmatprep.subr.mxu0 0.0
    %324 = vmatpush2.xpose.msra.mxu0 0.0
    %325 = vmatprep.subr.mxu0 0.0
    %326 = vmatpush2.xpose.msra.mxu0 0.0
    %327 = vmatprep.subr.mxu0 0.0
    %328 = vmatpush2.xpose.msra.mxu0 0.0
    %329 = vmatprep.subr.mxu0 0.0
    %330 = vmatpush2.xpose.msra.mxu0 0.0
    %331 = vmatprep.subr.mxu0 0.0
    %332 = vmatpush2.xpose.msra.mxu0 0.0
    %333 = vmatprep.mubr.f32.mxu0 0.0
    %334 = vmatmul.mubr.f32.gmra.mxu0 %v265
    %v335 = vpop.f32.mrf.mxu0
    %v336 = vadd.f32 0.0, %v335
    %v337 = vpop.f32.mrf.mxu0
    %338 = vdwg.mxu0
    %v339 = vsel %vm179, 1, 0
    %vm340 = vcmp.eq.s32.totalorder %v339, 1
    %v341 = vsel %vm340, %v258, -inf
    %v342 = vsel %vm340, %v336, -inf
    %v343 = vsel %vm185, %v341, -inf
    %344 = vmax.xlane.f32.xlu0 %v343
    %v345 = vpop.xlane.xlu0 %344
    %v346 = vsel %vm185, %v342, -inf
    %347 = vmax.xlane.f32.xlu0 %v346
    %v348 = vpop.xlane.xlu0 %347
    %v349 = vsub.f32 %v341, %v345
    %v350 = vsub.f32 %v342, %v348
    %v351 = vmul.f32 %v349, 1.442695
    %v352 = vpow.pop %v351
    %v353 = vmul.f32 %v350, 1.442695
    %v354 = vpow.pop %v353
    %v355 = vsel %vm185, %v352, 0.0
    %356 = vadd.xlane.f32.xlu0 %v355
    %v357 = vpop.xlane.xlu0 %356
    %v358 = vsel %vm185, %v354, 0.0
    %359 = vadd.xlane.f32.xlu0 %v358
    %v360 = vpop.xlane.xlu0 %359
    %v361 = vrcp.pop %v357
    %v362 = vmul.f32 %v352, %v361
    %v363 = vrcp.pop %v360
    %v364 = vmul.f32 %v354, %v363
    %365 = vrot.lane.b32.xlu0 %v167, 64
    %v366 = vpop.permute.xlu0 %365
    %v369 = vsel %vm185, %v362, 0
    %371 = vmatprep.subr.mxu0 0.0
    %372 = vmatpush1.msra.mxu0 0.0
    %373 = vmatprep.subr.mxu0 0.0
    %374 = vmatpush1.msra.mxu0 0.0
    %375 = vmatprep.subr.mxu0 0.0
    %376 = vmatpush1.msra.mxu0 0.0
    %377 = vmatprep.subr.mxu0 0.0
    %378 = vmatpush1.msra.mxu0 0.0
    %379 = vmatprep.subr.mxu0 0.0
    %380 = vmatpush1.msra.mxu0 0.0
    %381 = vmatprep.subr.mxu0 0.0
    %382 = vmatpush1.msra.mxu0 0.0
    %383 = vmatprep.subr.mxu0 0.0
    %384 = vmatpush1.msra.mxu0 0.0
    %385 = vmatprep.subr.mxu0 0.0
    %386 = vmatpush1.msra.mxu0 0.0
    %387 = vmatprep.subr.mxu0 0.0
    %388 = vmatpush1.msra.mxu0 0.0
    %389 = vmatprep.subr.mxu0 0.0
    %390 = vmatpush1.msra.mxu0 0.0
    %391 = vmatprep.subr.mxu0 0.0
    %392 = vmatpush1.msra.mxu0 0.0
    %393 = vmatprep.subr.mxu0 0.0
    %394 = vmatpush1.msra.mxu0 0.0
    %395 = vmatprep.subr.mxu0 0.0
    %396 = vmatpush1.msra.mxu0 0.0
    %397 = vmatprep.subr.mxu0 0.0
    %398 = vmatpush1.msra.mxu0 0.0
    %399 = vmatprep.subr.mxu0 0.0
    %400 = vmatpush1.msra.mxu0 0.0
    %401 = vmatprep.subr.mxu0 0.0
    %402 = vmatpush1.msra.mxu0 %v366
    %403 = vmatprep.subr.mxu0 0.0
    %404 = vmatpush2.msra.mxu0 0.0
    %405 = vmatprep.subr.mxu0 0.0
    %406 = vmatpush2.msra.mxu0 0.0
    %407 = vmatprep.subr.mxu0 0.0
    %408 = vmatpush2.msra.mxu0 0.0
    %409 = vmatprep.subr.mxu0 0.0
    %410 = vmatpush2.msra.mxu0 0.0
    %411 = vmatprep.subr.mxu0 0.0
    %412 = vmatpush2.msra.mxu0 0.0
    %413 = vmatprep.subr.mxu0 0.0
    %414 = vmatpush2.msra.mxu0 0.0
    %415 = vmatprep.subr.mxu0 0.0
    %416 = vmatpush2.msra.mxu0 0.0
    %417 = vmatprep.subr.mxu0 0.0
    %418 = vmatpush2.msra.mxu0 0.0
    %419 = vmatprep.subr.mxu0 0.0
    %420 = vmatpush2.msra.mxu0 0.0
    %421 = vmatprep.subr.mxu0 0.0
    %422 = vmatpush2.msra.mxu0 0.0
    %423 = vmatprep.subr.mxu0 0.0
    %424 = vmatpush2.msra.mxu0 0.0
    %425 = vmatprep.subr.mxu0 0.0
    %426 = vmatpush2.msra.mxu0 0.0
    %427 = vmatprep.subr.mxu0 0.0
    %428 = vmatpush2.msra.mxu0 0.0
    %429 = vmatprep.subr.mxu0 0.0
    %430 = vmatpush2.msra.mxu0 0.0
    %431 = vmatprep.subr.mxu0 0.0
    %432 = vmatpush2.msra.mxu0 0.0
    %433 = vmatprep.subr.mxu0 0.0
    %434 = vmatpush2.msra.mxu0 0.0
    %435 = vmatprep.mubr.f32.mxu0 0.0
    %436 = vmatmul.mubr.f32.gmra.mxu0 %v369
    %v437 = vpop.f32.mrf.mxu0
    %v438 = vadd.f32 0.0, %v437
    %v439 = vpop.f32.mrf.mxu0
    %440 = vdwg.mxu0
    %441 = vrot.lane.b32.xlu0 %v172, 64
    %v442 = vpop.permute.xlu0 %441
    %v445 = vsel %vm185, %v364, 0
    %447 = vmatprep.subr.mxu0 0.0
    %448 = vmatpush1.msra.mxu0 0.0
    %449 = vmatprep.subr.mxu0 0.0
    %450 = vmatpush1.msra.mxu0 0.0
    %451 = vmatprep.subr.mxu0 0.0
    %452 = vmatpush1.msra.mxu0 0.0
    %453 = vmatprep.subr.mxu0 0.0
    %454 = vmatpush1.msra.mxu0 0.0
    %455 = vmatprep.subr.mxu0 0.0
    %456 = vmatpush1.msra.mxu0 0.0
    %457 = vmatprep.subr.mxu0 0.0
    %458 = vmatpush1.msra.mxu0 0.0
    %459 = vmatprep.subr.mxu0 0.0
    %460 = vmatpush1.msra.mxu0 0.0
    %461 = vmatprep.subr.mxu0 0.0
    %462 = vmatpush1.msra.mxu0 0.0
    %463 = vmatprep.subr.mxu0 0.0
    %464 = vmatpush1.msra.mxu0 0.0
    %465 = vmatprep.subr.mxu0 0.0
    %466 = vmatpush1.msra.mxu0 0.0
    %467 = vmatprep.subr.mxu0 0.0
    %468 = vmatpush1.msra.mxu0 0.0
    %469 = vmatprep.subr.mxu0 0.0
    %470 = vmatpush1.msra.mxu0 0.0
    %471 = vmatprep.subr.mxu0 0.0
    %472 = vmatpush1.msra.mxu0 0.0
    %473 = vmatprep.subr.mxu0 0.0
    %474 = vmatpush1.msra.mxu0 0.0
    %475 = vmatprep.subr.mxu0 0.0
    %476 = vmatpush1.msra.mxu0 0.0
    %477 = vmatprep.subr.mxu0 0.0
    %478 = vmatpush1.msra.mxu0 %v442
    %479 = vmatprep.subr.mxu0 0.0
    %480 = vmatpush2.msra.mxu0 0.0
    %481 = vmatprep.subr.mxu0 0.0
    %482 = vmatpush2.msra.mxu0 0.0
    %483 = vmatprep.subr.mxu0 0.0
    %484 = vmatpush2.msra.mxu0 0.0
    %485 = vmatprep.subr.mxu0 0.0
    %486 = vmatpush2.msra.mxu0 0.0
    %487 = vmatprep.subr.mxu0 0.0
    %488 = vmatpush2.msra.mxu0 0.0
    %489 = vmatprep.subr.mxu0 0.0
    %490 = vmatpush2.msra.mxu0 0.0
    %491 = vmatprep.subr.mxu0 0.0
    %492 = vmatpush2.msra.mxu0 0.0
    %493 = vmatprep.subr.mxu0 0.0
    %494 = vmatpush2.msra.mxu0 0.0
    %495 = vmatprep.subr.mxu0 0.0
    %496 = vmatpush2.msra.mxu0 0.0
    %497 = vmatprep.subr.mxu0 0.0
    %498 = vmatpush2.msra.mxu0 0.0
    %499 = vmatprep.subr.mxu0 0.0
    %500 = vmatpush2.msra.mxu0 0.0
    %501 = vmatprep.subr.mxu0 0.0
    %502 = vmatpush2.msra.mxu0 0.0
    %503 = vmatprep.subr.mxu0 0.0
    %504 = vmatpush2.msra.mxu0 0.0
    %505 = vmatprep.subr.mxu0 0.0
    %506 = vmatpush2.msra.mxu0 0.0
    %507 = vmatprep.subr.mxu0 0.0
    %508 = vmatpush2.msra.mxu0 0.0
    %509 = vmatprep.subr.mxu0 0.0
    %510 = vmatpush2.msra.mxu0 0.0
    %511 = vmatprep.mubr.f32.mxu0 0.0
    %512 = vmatmul.mubr.f32.gmra.mxu0 %v445
    %v513 = vpop.f32.mrf.mxu0
    %v514 = vadd.f32 0.0, %v513
    %v515 = vpop.f32.mrf.mxu0
    %516 = vdwg.mxu0
    %v517 = vld [vmem:[%s4] sm:$0xff]
    %518 = vrot.lane.b32.xlu0 %v180, 120
    %v519 = vpop.permute.xlu0 %518
    %520 = vrot.lane.b32.xlu0 %v167, 88
    %v521 = vpop.permute.xlu0 %520
    %v522 = vsel %vm185, %v519, 0
    %v524 = vsel %vm185, %v521, 0
    %526 = vmatprep.subr.mxu0 0.0
    %527 = vmatpush1.xpose.msra.mxu0 0.0
    %528 = vmatprep.subr.mxu0 0.0
    %529 = vmatpush1.xpose.msra.mxu0 0.0
    %530 = vmatprep.subr.mxu0 0.0
    %531 = vmatpush1.xpose.msra.mxu0 0.0
    %532 = vmatprep.subr.mxu0 0.0
    %533 = vmatpush1.xpose.msra.mxu0 0.0
    %534 = vmatprep.subr.mxu0 0.0
    %535 = vmatpush1.xpose.msra.mxu0 0.0
    %536 = vmatprep.subr.mxu0 0.0
    %537 = vmatpush1.xpose.msra.mxu0 0.0
    %538 = vmatprep.subr.mxu0 0.0
    %539 = vmatpush1.xpose.msra.mxu0 0.0
    %540 = vmatprep.subr.mxu0 0.0
    %541 = vmatpush1.xpose.msra.mxu0 0.0
    %542 = vmatprep.subr.mxu0 0.0
    %543 = vmatpush1.xpose.msra.mxu0 0.0
    %544 = vmatprep.subr.mxu0 0.0
    %545 = vmatpush1.xpose.msra.mxu0 0.0
    %546 = vmatprep.subr.mxu0 0.0
    %547 = vmatpush1.xpose.msra.mxu0 0.0
    %548 = vmatprep.subr.mxu0 0.0
    %549 = vmatpush1.xpose.msra.mxu0 0.0
    %550 = vmatprep.subr.mxu0 0.0
    %551 = vmatpush1.xpose.msra.mxu0 0.0
    %552 = vmatprep.subr.mxu0 0.0
    %553 = vmatpush1.xpose.msra.mxu0 0.0
    %554 = vmatprep.subr.mxu0 0.0
    %555 = vmatpush1.xpose.msra.mxu0 0.0
    %556 = vmatprep.subr.mxu0 0.0
    %557 = vmatpush1.xpose.msra.mxu0 %v524
    %558 = vmatprep.subr.mxu0 0.0
    %559 = vmatpush2.xpose.msra.mxu0 0.0
    %560 = vmatprep.subr.mxu0 0.0
    %561 = vmatpush2.xpose.msra.mxu0 0.0
    %562 = vmatprep.subr.mxu0 0.0
    %563 = vmatpush2.xpose.msra.mxu0 0.0
    %564 = vmatprep.subr.mxu0 0.0
    %565 = vmatpush2.xpose.msra.mxu0 0.0
    %566 = vmatprep.subr.mxu0 0.0
    %567 = vmatpush2.xpose.msra.mxu0 0.0
    %568 = vmatprep.subr.mxu0 0.0
    %569 = vmatpush2.xpose.msra.mxu0 0.0
    %570 = vmatprep.subr.mxu0 0.0
    %571 = vmatpush2.xpose.msra.mxu0 0.0
    %572 = vmatprep.subr.mxu0 0.0
    %573 = vmatpush2.xpose.msra.mxu0 0.0
    %574 = vmatprep.subr.mxu0 0.0
    %575 = vmatpush2.xpose.msra.mxu0 0.0
    %576 = vmatprep.subr.mxu0 0.0
    %577 = vmatpush2.xpose.msra.mxu0 0.0
    %578 = vmatprep.subr.mxu0 0.0
    %579 = vmatpush2.xpose.msra.mxu0 0.0
    %580 = vmatprep.subr.mxu0 0.0
    %581 = vmatpush2.xpose.msra.mxu0 0.0
    %582 = vmatprep.subr.mxu0 0.0
    %583 = vmatpush2.xpose.msra.mxu0 0.0
    %584 = vmatprep.subr.mxu0 0.0
    %585 = vmatpush2.xpose.msra.mxu0 0.0
    %586 = vmatprep.subr.mxu0 0.0
    %587 = vmatpush2.xpose.msra.mxu0 0.0
    %588 = vmatprep.subr.mxu0 0.0
    %589 = vmatpush2.xpose.msra.mxu0 0.0
    %590 = vmatprep.mubr.f32.mxu0 0.0
    %591 = vmatmul.mubr.f32.gmra.mxu0 %v522
    %v592 = vpop.f32.mrf.mxu0
    %v593 = vadd.f32 0.0, %v592
    %v594 = vpop.f32.mrf.mxu0
    %595 = vdwg.mxu0
    %596 = vrot.lane.b32.xlu0 %v181, 120
    %v597 = vpop.permute.xlu0 %596
    %598 = vrot.lane.b32.xlu0 %v172, 88
    %v599 = vpop.permute.xlu0 %598
    %v600 = vsel %vm185, %v597, 0
    %v602 = vsel %vm185, %v599, 0
    %604 = vmatprep.subr.mxu0 0.0
    %605 = vmatpush1.xpose.msra.mxu0 0.0
    %606 = vmatprep.subr.mxu0 0.0
    %607 = vmatpush1.xpose.msra.mxu0 0.0
    %608 = vmatprep.subr.mxu0 0.0
    %609 = vmatpush1.xpose.msra.mxu0 0.0
    %610 = vmatprep.subr.mxu0 0.0
    %611 = vmatpush1.xpose.msra.mxu0 0.0
    %612 = vmatprep.subr.mxu0 0.0
    %613 = vmatpush1.xpose.msra.mxu0 0.0
    %614 = vmatprep.subr.mxu0 0.0
    %615 = vmatpush1.xpose.msra.mxu0 0.0
    %616 = vmatprep.subr.mxu0 0.0
    %617 = vmatpush1.xpose.msra.mxu0 0.0
    %618 = vmatprep.subr.mxu0 0.0
    %619 = vmatpush1.xpose.msra.mxu0 0.0
    %620 = vmatprep.subr.mxu0 0.0
    %621 = vmatpush1.xpose.msra.mxu0 0.0
    %622 = vmatprep.subr.mxu0 0.0
    %623 = vmatpush1.xpose.msra.mxu0 0.0
    %624 = vmatprep.subr.mxu0 0.0
    %625 = vmatpush1.xpose.msra.mxu0 0.0
    %626 = vmatprep.subr.mxu0 0.0
    %627 = vmatpush1.xpose.msra.mxu0 0.0
    %628 = vmatprep.subr.mxu0 0.0
    %629 = vmatpush1.xpose.msra.mxu0 0.0
    %630 = vmatprep.subr.mxu0 0.0
    %631 = vmatpush1.xpose.msra.mxu0 0.0
    %632 = vmatprep.subr.mxu0 0.0
    %633 = vmatpush1.xpose.msra.mxu0 0.0
    %634 = vmatprep.subr.mxu0 0.0
    %635 = vmatpush1.xpose.msra.mxu0 %v602
    %636 = vmatprep.subr.mxu0 0.0
    %637 = vmatpush2.xpose.msra.mxu0 0.0
    %638 = vmatprep.subr.mxu0 0.0
    %639 = vmatpush2.xpose.msra.mxu0 0.0
    %640 = vmatprep.subr.mxu0 0.0
    %641 = vmatpush2.xpose.msra.mxu0 0.0
    %642 = vmatprep.subr.mxu0 0.0
    %643 = vmatpush2.xpose.msra.mxu0 0.0
    %644 = vmatprep.subr.mxu0 0.0
    %645 = vmatpush2.xpose.msra.mxu0 0.0
    %646 = vmatprep.subr.mxu0 0.0
    %647 = vmatpush2.xpose.msra.mxu0 0.0
    %648 = vmatprep.subr.mxu0 0.0
    %649 = vmatpush2.xpose.msra.mxu0 0.0
    %650 = vmatprep.subr.mxu0 0.0
    %651 = vmatpush2.xpose.msra.mxu0 0.0
    %652 = vmatprep.subr.mxu0 0.0
    %653 = vmatpush2.xpose.msra.mxu0 0.0
    %654 = vmatprep.subr.mxu0 0.0
    %655 = vmatpush2.xpose.msra.mxu0 0.0
    %656 = vmatprep.subr.mxu0 0.0
    %657 = vmatpush2.xpose.msra.mxu0 0.0
    %658 = vmatprep.subr.mxu0 0.0
    %659 = vmatpush2.xpose.msra.mxu0 0.0
    %660 = vmatprep.subr.mxu0 0.0
    %661 = vmatpush2.xpose.msra.mxu0 0.0
    %662 = vmatprep.subr.mxu0 0.0
    %663 = vmatpush2.xpose.msra.mxu0 0.0
    %664 = vmatprep.subr.mxu0 0.0
    %665 = vmatpush2.xpose.msra.mxu0 0.0
    %666 = vmatprep.subr.mxu0 0.0
    %667 = vmatpush2.xpose.msra.mxu0 0.0
    %668 = vmatprep.mubr.f32.mxu0 0.0
    %669 = vmatmul.mubr.f32.gmra.mxu0 %v600
    %v670 = vpop.f32.mrf.mxu0
    %v671 = vadd.f32 0.0, %v670
    %v672 = vpop.f32.mrf.mxu0
    %673 = vdwg.mxu0
    %v674 = vsel %vm340, %v593, -inf
    %v675 = vsel %vm340, %v671, -inf
    %v676 = vsel %vm185, %v674, -inf
    %677 = vmax.xlane.f32.xlu0 %v676
    %v678 = vpop.xlane.xlu0 %677
    %v679 = vsel %vm185, %v675, -inf
    %680 = vmax.xlane.f32.xlu0 %v679
    %v681 = vpop.xlane.xlu0 %680
    %v682 = vsub.f32 %v674, %v678
    %v683 = vsub.f32 %v675, %v681
    %v684 = vmul.f32 %v682, 1.442695
    %v685 = vpow.pop %v684
    %v686 = vmul.f32 %v683, 1.442695
    %v687 = vpow.pop %v686
    %v688 = vsel %vm185, %v685, 0.0
    %689 = vadd.xlane.f32.xlu0 %v688
    %v690 = vpop.xlane.xlu0 %689
    %v691 = vsel %vm185, %v687, 0.0
    %692 = vadd.xlane.f32.xlu0 %v691
    %v693 = vpop.xlane.xlu0 %692
    %v694 = vrcp.pop %v690
    %v695 = vmul.f32 %v685, %v694
    %v696 = vrcp.pop %v693
    %v697 = vmul.f32 %v687, %v696
    %698 = vrot.lane.b32.xlu0 %v167, 56
    %v699 = vpop.permute.xlu0 %698
    %v702 = vsel %vm185, %v695, 0
    %704 = vmatprep.subr.mxu0 0.0
    %705 = vmatpush1.msra.mxu0 0.0
    %706 = vmatprep.subr.mxu0 0.0
    %707 = vmatpush1.msra.mxu0 0.0
    %708 = vmatprep.subr.mxu0 0.0
    %709 = vmatpush1.msra.mxu0 0.0
    %710 = vmatprep.subr.mxu0 0.0
    %711 = vmatpush1.msra.mxu0 0.0
    %712 = vmatprep.subr.mxu0 0.0
    %713 = vmatpush1.msra.mxu0 0.0
    %714 = vmatprep.subr.mxu0 0.0
    %715 = vmatpush1.msra.mxu0 0.0
    %716 = vmatprep.subr.mxu0 0.0
    %717 = vmatpush1.msra.mxu0 0.0
    %718 = vmatprep.subr.mxu0 0.0
    %719 = vmatpush1.msra.mxu0 0.0
    %720 = vmatprep.subr.mxu0 0.0
    %721 = vmatpush1.msra.mxu0 0.0
    %722 = vmatprep.subr.mxu0 0.0
    %723 = vmatpush1.msra.mxu0 0.0
    %724 = vmatprep.subr.mxu0 0.0
    %725 = vmatpush1.msra.mxu0 0.0
    %726 = vmatprep.subr.mxu0 0.0
    %727 = vmatpush1.msra.mxu0 0.0
    %728 = vmatprep.subr.mxu0 0.0
    %729 = vmatpush1.msra.mxu0 0.0
    %730 = vmatprep.subr.mxu0 0.0
    %731 = vmatpush1.msra.mxu0 0.0
    %732 = vmatprep.subr.mxu0 0.0
    %733 = vmatpush1.msra.mxu0 0.0
    %734 = vmatprep.subr.mxu0 0.0
    %735 = vmatpush1.msra.mxu0 %v699
    %736 = vmatprep.subr.mxu0 0.0
    %737 = vmatpush2.msra.mxu0 0.0
    %738 = vmatprep.subr.mxu0 0.0
    %739 = vmatpush2.msra.mxu0 0.0
    %740 = vmatprep.subr.mxu0 0.0
    %741 = vmatpush2.msra.mxu0 0.0
    %742 = vmatprep.subr.mxu0 0.0
    %743 = vmatpush2.msra.mxu0 0.0
    %744 = vmatprep.subr.mxu0 0.0
    %745 = vmatpush2.msra.mxu0 0.0
    %746 = vmatprep.subr.mxu0 0.0
    %747 = vmatpush2.msra.mxu0 0.0
    %748 = vmatprep.subr.mxu0 0.0
    %749 = vmatpush2.msra.mxu0 0.0
    %750 = vmatprep.subr.mxu0 0.0
    %751 = vmatpush2.msra.mxu0 0.0
    %752 = vmatprep.subr.mxu0 0.0
    %753 = vmatpush2.msra.mxu0 0.0
    %754 = vmatprep.subr.mxu0 0.0
    %755 = vmatpush2.msra.mxu0 0.0
    %756 = vmatprep.subr.mxu0 0.0
    %757 = vmatpush2.msra.mxu0 0.0
    %758 = vmatprep.subr.mxu0 0.0
    %759 = vmatpush2.msra.mxu0 0.0
    %760 = vmatprep.subr.mxu0 0.0
    %761 = vmatpush2.msra.mxu0 0.0
    %762 = vmatprep.subr.mxu0 0.0
    %763 = vmatpush2.msra.mxu0 0.0
    %764 = vmatprep.subr.mxu0 0.0
    %765 = vmatpush2.msra.mxu0 0.0
    %766 = vmatprep.subr.mxu0 0.0
    %767 = vmatpush2.msra.mxu0 0.0
    %768 = vmatprep.mubr.f32.mxu0 0.0
    %769 = vmatmul.mubr.f32.gmra.mxu0 %v702
    %v770 = vpop.f32.mrf.mxu0
    %v771 = vadd.f32 0.0, %v770
    %v772 = vpop.f32.mrf.mxu0
    %773 = vdwg.mxu0
    %774 = vrot.lane.b32.xlu0 %v172, 56
    %v775 = vpop.permute.xlu0 %774
    %v778 = vsel %vm185, %v697, 0
    %780 = vmatprep.subr.mxu0 0.0
    %781 = vmatpush1.msra.mxu0 0.0
    %782 = vmatprep.subr.mxu0 0.0
    %783 = vmatpush1.msra.mxu0 0.0
    %784 = vmatprep.subr.mxu0 0.0
    %785 = vmatpush1.msra.mxu0 0.0
    %786 = vmatprep.subr.mxu0 0.0
    %787 = vmatpush1.msra.mxu0 0.0
    %788 = vmatprep.subr.mxu0 0.0
    %789 = vmatpush1.msra.mxu0 0.0
    %790 = vmatprep.subr.mxu0 0.0
    %791 = vmatpush1.msra.mxu0 0.0
    %792 = vmatprep.subr.mxu0 0.0
    %793 = vmatpush1.msra.mxu0 0.0
    %794 = vmatprep.subr.mxu0 0.0
    %795 = vmatpush1.msra.mxu0 0.0
    %796 = vmatprep.subr.mxu0 0.0
    %797 = vmatpush1.msra.mxu0 0.0
    %798 = vmatprep.subr.mxu0 0.0
    %799 = vmatpush1.msra.mxu0 0.0
    %800 = vmatprep.subr.mxu0 0.0
    %801 = vmatpush1.msra.mxu0 0.0
    %802 = vmatprep.subr.mxu0 0.0
    %803 = vmatpush1.msra.mxu0 0.0
    %804 = vmatprep.subr.mxu0 0.0
    %805 = vmatpush1.msra.mxu0 0.0
    %806 = vmatprep.subr.mxu0 0.0
    %807 = vmatpush1.msra.mxu0 0.0
    %808 = vmatprep.subr.mxu0 0.0
    %809 = vmatpush1.msra.mxu0 0.0
    %810 = vmatprep.subr.mxu0 0.0
    %811 = vmatpush1.msra.mxu0 %v775
    %812 = vmatprep.subr.mxu0 0.0
    %813 = vmatpush2.msra.mxu0 0.0
    %814 = vmatprep.subr.mxu0 0.0
    %815 = vmatpush2.msra.mxu0 0.0
    %816 = vmatprep.subr.mxu0 0.0
    %817 = vmatpush2.msra.mxu0 0.0
    %818 = vmatprep.subr.mxu0 0.0
    %819 = vmatpush2.msra.mxu0 0.0
    %820 = vmatprep.subr.mxu0 0.0
    %821 = vmatpush2.msra.mxu0 0.0
    %822 = vmatprep.subr.mxu0 0.0
    %823 = vmatpush2.msra.mxu0 0.0
    %824 = vmatprep.subr.mxu0 0.0
    %825 = vmatpush2.msra.mxu0 0.0
    %826 = vmatprep.subr.mxu0 0.0
    %827 = vmatpush2.msra.mxu0 0.0
    %828 = vmatprep.subr.mxu0 0.0
    %829 = vmatpush2.msra.mxu0 0.0
    %830 = vmatprep.subr.mxu0 0.0
    %831 = vmatpush2.msra.mxu0 0.0
    %832 = vmatprep.subr.mxu0 0.0
    %833 = vmatpush2.msra.mxu0 0.0
    %834 = vmatprep.subr.mxu0 0.0
    %835 = vmatpush2.msra.mxu0 0.0
    %836 = vmatprep.subr.mxu0 0.0
    %837 = vmatpush2.msra.mxu0 0.0
    %838 = vmatprep.subr.mxu0 0.0
    %839 = vmatpush2.msra.mxu0 0.0
    %840 = vmatprep.subr.mxu0 0.0
    %841 = vmatpush2.msra.mxu0 0.0
    %842 = vmatprep.subr.mxu0 0.0
    %843 = vmatpush2.msra.mxu0 0.0
    %844 = vmatprep.mubr.f32.mxu0 0.0
    %845 = vmatmul.mubr.f32.gmra.mxu0 %v778
    %v846 = vpop.f32.mrf.mxu0
    %v847 = vadd.f32 0.0, %v846
    %v848 = vpop.f32.mrf.mxu0
    %849 = vdwg.mxu0
    %v850 = vld [vmem:[%s4 + $0x8] sm:$0xff]
    %v852 = vsel %vm185, %v771, 0
    %v855 = vsel %vm185, %v847, 0
    %857 = vmatprep.subr.mxu0 0.0
    %858 = vmatpush1.msra.mxu0 0.0
    %859 = vmatprep.subr.mxu0 0.0
    %860 = vmatpush1.msra.mxu0 0.0
    %861 = vmatprep.subr.mxu0 0.0
    %862 = vmatpush1.msra.mxu0 0.0
    %863 = vmatprep.subr.mxu0 0.0
    %864 = vmatpush1.msra.mxu0 0.0
    %865 = vmatprep.subr.mxu0 0.0
    %866 = vmatpush1.msra.mxu0 0.0
    %867 = vmatprep.subr.mxu0 0.0
    %868 = vmatpush1.msra.mxu0 0.0
    %869 = vmatprep.subr.mxu0 0.0
    %870 = vmatpush1.msra.mxu0 0.0
    %871 = vmatprep.subr.mxu0 0.0
    %872 = vmatpush1.msra.mxu0 0.0
    %873 = vmatprep.subr.mxu0 0.0
    %874 = vmatpush1.msra.mxu0 0.0
    %875 = vmatprep.subr.mxu0 0.0
    %876 = vmatpush1.msra.mxu0 0.0
    %877 = vmatprep.subr.mxu0 0.0
    %878 = vmatpush1.msra.mxu0 0.0
    %879 = vmatprep.subr.mxu0 0.0
    %880 = vmatpush1.msra.mxu0 0.0
    %881 = vmatprep.subr.mxu0 0.0
    %882 = vmatpush1.msra.mxu0 0.0
    %883 = vmatprep.subr.mxu0 0.0
    %884 = vmatpush1.msra.mxu0 0.0
    %885 = vmatprep.subr.mxu0 0.0
    %886 = vmatpush1.msra.mxu0 0.0
    %887 = vmatprep.subr.mxu0 0.0
    %888 = vmatpush1.msra.mxu0 %v850
    %889 = vmatprep.subr.mxu0 0.0
    %890 = vmatpush2.msra.mxu0 0.0
    %891 = vmatprep.subr.mxu0 0.0
    %892 = vmatpush2.msra.mxu0 0.0
    %893 = vmatprep.subr.mxu0 0.0
    %894 = vmatpush2.msra.mxu0 0.0
    %895 = vmatprep.subr.mxu0 0.0
    %896 = vmatpush2.msra.mxu0 0.0
    %897 = vmatprep.subr.mxu0 0.0
    %898 = vmatpush2.msra.mxu0 0.0
    %899 = vmatprep.subr.mxu0 0.0
    %900 = vmatpush2.msra.mxu0 0.0
    %901 = vmatprep.subr.mxu0 0.0
    %902 = vmatpush2.msra.mxu0 0.0
    %903 = vmatprep.subr.mxu0 0.0
    %904 = vmatpush2.msra.mxu0 0.0
    %905 = vmatprep.subr.mxu0 0.0
    %906 = vmatpush2.msra.mxu0 0.0
    %907 = vmatprep.subr.mxu0 0.0
    %908 = vmatpush2.msra.mxu0 0.0
    %909 = vmatprep.subr.mxu0 0.0
    %910 = vmatpush2.msra.mxu0 0.0
    %911 = vmatprep.subr.mxu0 0.0
    %912 = vmatpush2.msra.mxu0 0.0
    %913 = vmatprep.subr.mxu0 0.0
    %914 = vmatpush2.msra.mxu0 0.0
    %915 = vmatprep.subr.mxu0 0.0
    %916 = vmatpush2.msra.mxu0 0.0
    %917 = vmatprep.subr.mxu0 0.0
    %918 = vmatpush2.msra.mxu0 0.0
    %919 = vmatprep.subr.mxu0 0.0
    %920 = vmatpush2.msra.mxu0 0.0
    %921 = vmatprep.mubr.f32.mxu0 0.0
    %922 = vmatmul.mubr.f32.gmra.mxu0 %v852
    %v923 = vpop.f32.mrf.mxu0
    %v924 = vadd.f32 0.0, %v923
    %v925 = vpop.f32.mrf.mxu0
    %926 = vmatprep.mubr.f32.mxu0 0.0
    %927 = vmatmul.mubr.f32.gmra.mxu0 %v855
    %v928 = vpop.f32.mrf.mxu0
    %v929 = vadd.f32 0.0, %v928
    %v930 = vpop.f32.mrf.mxu0
    %931 = vdwg.mxu0
    %v933 = vsel %vm185, %v438, 0
    %v936 = vsel %vm185, %v514, 0
    %938 = vmatprep.subr.mxu0 0.0
    %939 = vmatpush1.msra.mxu0 0.0
    %940 = vmatprep.subr.mxu0 0.0
    %941 = vmatpush1.msra.mxu0 0.0
    %942 = vmatprep.subr.mxu0 0.0
    %943 = vmatpush1.msra.mxu0 0.0
    %944 = vmatprep.subr.mxu0 0.0
    %945 = vmatpush1.msra.mxu0 0.0
    %946 = vmatprep.subr.mxu0 0.0
    %947 = vmatpush1.msra.mxu0 0.0
    %948 = vmatprep.subr.mxu0 0.0
    %949 = vmatpush1.msra.mxu0 0.0
    %950 = vmatprep.subr.mxu0 0.0
    %951 = vmatpush1.msra.mxu0 0.0
    %952 = vmatprep.subr.mxu0 0.0
    %953 = vmatpush1.msra.mxu0 0.0
    %954 = vmatprep.subr.mxu0 0.0
    %955 = vmatpush1.msra.mxu0 0.0
    %956 = vmatprep.subr.mxu0 0.0
    %957 = vmatpush1.msra.mxu0 0.0
    %958 = vmatprep.subr.mxu0 0.0
    %959 = vmatpush1.msra.mxu0 0.0
    %960 = vmatprep.subr.mxu0 0.0
    %961 = vmatpush1.msra.mxu0 0.0
    %962 = vmatprep.subr.mxu0 0.0
    %963 = vmatpush1.msra.mxu0 0.0
    %964 = vmatprep.subr.mxu0 0.0
    %965 = vmatpush1.msra.mxu0 0.0
    %966 = vmatprep.subr.mxu0 0.0
    %967 = vmatpush1.msra.mxu0 0.0
    %968 = vmatprep.subr.mxu0 0.0
    %969 = vmatpush1.msra.mxu0 %v517
    %970 = vmatprep.subr.mxu0 0.0
    %971 = vmatpush2.msra.mxu0 0.0
    %972 = vmatprep.subr.mxu0 0.0
    %973 = vmatpush2.msra.mxu0 0.0
    %974 = vmatprep.subr.mxu0 0.0
    %975 = vmatpush2.msra.mxu0 0.0
    %976 = vmatprep.subr.mxu0 0.0
    %977 = vmatpush2.msra.mxu0 0.0
    %978 = vmatprep.subr.mxu0 0.0
    %979 = vmatpush2.msra.mxu0 0.0
    %980 = vmatprep.subr.mxu0 0.0
    %981 = vmatpush2.msra.mxu0 0.0
    %982 = vmatprep.subr.mxu0 0.0
    %983 = vmatpush2.msra.mxu0 0.0
    %984 = vmatprep.subr.mxu0 0.0
    %985 = vmatpush2.msra.mxu0 0.0
    %986 = vmatprep.subr.mxu0 0.0
    %987 = vmatpush2.msra.mxu0 0.0
    %988 = vmatprep.subr.mxu0 0.0
    %989 = vmatpush2.msra.mxu0 0.0
    %990 = vmatprep.subr.mxu0 0.0
    %991 = vmatpush2.msra.mxu0 0.0
    %992 = vmatprep.subr.mxu0 0.0
    %993 = vmatpush2.msra.mxu0 0.0
    %994 = vmatprep.subr.mxu0 0.0
    %995 = vmatpush2.msra.mxu0 0.0
    %996 = vmatprep.subr.mxu0 0.0
    %997 = vmatpush2.msra.mxu0 0.0
    %998 = vmatprep.subr.mxu0 0.0
    %999 = vmatpush2.msra.mxu0 0.0
    %1000 = vmatprep.subr.mxu0 0.0
    %1001 = vmatpush2.msra.mxu0 0.0
    %1002 = vmatprep.mubr.f32.mxu0 0.0
    %1003 = vmatmul.mubr.f32.gmra.mxu0 %v933
    %v1004 = vpop.f32.mrf.mxu0
    %v1005 = vadd.f32 %v924, %v1004
    %v1006 = vpop.f32.mrf.mxu0
    %1007 = vmatprep.mubr.f32.mxu0 0.0
    %1008 = vmatmul.mubr.f32.gmra.mxu0 %v936
    %v1009 = vpop.f32.mrf.mxu0
    %v1010 = vadd.f32 %v929, %v1009
    %v1011 = vpop.f32.mrf.mxu0
    %1012 = vdwg.mxu0
    %1013 = vrot.lane.b32.xlu0 %v180, 112
    %v1014 = vpop.permute.xlu0 %1013
    %1015 = vrot.lane.b32.xlu0 %v167, 80
    %v1016 = vpop.permute.xlu0 %1015
    %v1017 = vsel %vm185, %v1014, 0
    %v1019 = vsel %vm185, %v1016, 0
    %1021 = vmatprep.subr.mxu0 0.0
    %1022 = vmatpush1.xpose.msra.mxu0 0.0
    %1023 = vmatprep.subr.mxu0 0.0
    %1024 = vmatpush1.xpose.msra.mxu0 0.0
    %1025 = vmatprep.subr.mxu0 0.0
    %1026 = vmatpush1.xpose.msra.mxu0 0.0
    %1027 = vmatprep.subr.mxu0 0.0
    %1028 = vmatpush1.xpose.msra.mxu0 0.0
    %1029 = vmatprep.subr.mxu0 0.0
    %1030 = vmatpush1.xpose.msra.mxu0 0.0
    %1031 = vmatprep.subr.mxu0 0.0
    %1032 = vmatpush1.xpose.msra.mxu0 0.0
    %1033 = vmatprep.subr.mxu0 0.0
    %1034 = vmatpush1.xpose.msra.mxu0 0.0
    %1035 = vmatprep.subr.mxu0 0.0
    %1036 = vmatpush1.xpose.msra.mxu0 0.0
    %1037 = vmatprep.subr.mxu0 0.0
    %1038 = vmatpush1.xpose.msra.mxu0 0.0
    %1039 = vmatprep.subr.mxu0 0.0
    %1040 = vmatpush1.xpose.msra.mxu0 0.0
    %1041 = vmatprep.subr.mxu0 0.0
    %1042 = vmatpush1.xpose.msra.mxu0 0.0
    %1043 = vmatprep.subr.mxu0 0.0
    %1044 = vmatpush1.xpose.msra.mxu0 0.0
    %1045 = vmatprep.subr.mxu0 0.0
    %1046 = vmatpush1.xpose.msra.mxu0 0.0
    %1047 = vmatprep.subr.mxu0 0.0
    %1048 = vmatpush1.xpose.msra.mxu0 0.0
    %1049 = vmatprep.subr.mxu0 0.0
    %1050 = vmatpush1.xpose.msra.mxu0 0.0
    %1051 = vmatprep.subr.mxu0 0.0
    %1052 = vmatpush1.xpose.msra.mxu0 %v1019
    %1053 = vmatprep.subr.mxu0 0.0
    %1054 = vmatpush2.xpose.msra.mxu0 0.0
    %1055 = vmatprep.subr.mxu0 0.0
    %1056 = vmatpush2.xpose.msra.mxu0 0.0
    %1057 = vmatprep.subr.mxu0 0.0
    %1058 = vmatpush2.xpose.msra.mxu0 0.0
    %1059 = vmatprep.subr.mxu0 0.0
    %1060 = vmatpush2.xpose.msra.mxu0 0.0
    %1061 = vmatprep.subr.mxu0 0.0
    %1062 = vmatpush2.xpose.msra.mxu0 0.0
    %1063 = vmatprep.subr.mxu0 0.0
    %1064 = vmatpush2.xpose.msra.mxu0 0.0
    %1065 = vmatprep.subr.mxu0 0.0
    %1066 = vmatpush2.xpose.msra.mxu0 0.0
    %1067 = vmatprep.subr.mxu0 0.0
    %1068 = vmatpush2.xpose.msra.mxu0 0.0
    %1069 = vmatprep.subr.mxu0 0.0
    %1070 = vmatpush2.xpose.msra.mxu0 0.0
    %1071 = vmatprep.subr.mxu0 0.0
    %1072 = vmatpush2.xpose.msra.mxu0 0.0
    %1073 = vmatprep.subr.mxu0 0.0
    %1074 = vmatpush2.xpose.msra.mxu0 0.0
    %1075 = vmatprep.subr.mxu0 0.0
    %1076 = vmatpush2.xpose.msra.mxu0 0.0
    %1077 = vmatprep.subr.mxu0 0.0
    %1078 = vmatpush2.xpose.msra.mxu0 0.0
    %1079 = vmatprep.subr.mxu0 0.0
    %1080 = vmatpush2.xpose.msra.mxu0 0.0
    %1081 = vmatprep.subr.mxu0 0.0
    %1082 = vmatpush2.xpose.msra.mxu0 0.0
    %1083 = vmatprep.subr.mxu0 0.0
    %1084 = vmatpush2.xpose.msra.mxu0 0.0
    %1085 = vmatprep.mubr.f32.mxu0 0.0
    %1086 = vmatmul.mubr.f32.gmra.mxu0 %v1017
    %v1087 = vpop.f32.mrf.mxu0
    %v1088 = vadd.f32 0.0, %v1087
    %v1089 = vpop.f32.mrf.mxu0
    %1090 = vdwg.mxu0
    %1091 = vrot.lane.b32.xlu0 %v181, 112
    %v1092 = vpop.permute.xlu0 %1091
    %1093 = vrot.lane.b32.xlu0 %v172, 80
    %v1094 = vpop.permute.xlu0 %1093
    %v1095 = vsel %vm185, %v1092, 0
    %v1097 = vsel %vm185, %v1094, 0
    %1099 = vmatprep.subr.mxu0 0.0
    %1100 = vmatpush1.xpose.msra.mxu0 0.0
    %1101 = vmatprep.subr.mxu0 0.0
    %1102 = vmatpush1.xpose.msra.mxu0 0.0
    %1103 = vmatprep.subr.mxu0 0.0
    %1104 = vmatpush1.xpose.msra.mxu0 0.0
    %1105 = vmatprep.subr.mxu0 0.0
    %1106 = vmatpush1.xpose.msra.mxu0 0.0
    %1107 = vmatprep.subr.mxu0 0.0
    %1108 = vmatpush1.xpose.msra.mxu0 0.0
    %1109 = vmatprep.subr.mxu0 0.0
    %1110 = vmatpush1.xpose.msra.mxu0 0.0
    %1111 = vmatprep.subr.mxu0 0.0
    %1112 = vmatpush1.xpose.msra.mxu0 0.0
    %1113 = vmatprep.subr.mxu0 0.0
    %1114 = vmatpush1.xpose.msra.mxu0 0.0
    %1115 = vmatprep.subr.mxu0 0.0
    %1116 = vmatpush1.xpose.msra.mxu0 0.0
    %1117 = vmatprep.subr.mxu0 0.0
    %1118 = vmatpush1.xpose.msra.mxu0 0.0
    %1119 = vmatprep.subr.mxu0 0.0
    %1120 = vmatpush1.xpose.msra.mxu0 0.0
    %1121 = vmatprep.subr.mxu0 0.0
    %1122 = vmatpush1.xpose.msra.mxu0 0.0
    %1123 = vmatprep.subr.mxu0 0.0
    %1124 = vmatpush1.xpose.msra.mxu0 0.0
    %1125 = vmatprep.subr.mxu0 0.0
    %1126 = vmatpush1.xpose.msra.mxu0 0.0
    %1127 = vmatprep.subr.mxu0 0.0
    %1128 = vmatpush1.xpose.msra.mxu0 0.0
    %1129 = vmatprep.subr.mxu0 0.0
    %1130 = vmatpush1.xpose.msra.mxu0 %v1097
    %1131 = vmatprep.subr.mxu0 0.0
    %1132 = vmatpush2.xpose.msra.mxu0 0.0
    %1133 = vmatprep.subr.mxu0 0.0
    %1134 = vmatpush2.xpose.msra.mxu0 0.0
    %1135 = vmatprep.subr.mxu0 0.0
    %1136 = vmatpush2.xpose.msra.mxu0 0.0
    %1137 = vmatprep.subr.mxu0 0.0
    %1138 = vmatpush2.xpose.msra.mxu0 0.0
    %1139 = vmatprep.subr.mxu0 0.0
    %1140 = vmatpush2.xpose.msra.mxu0 0.0
    %1141 = vmatprep.subr.mxu0 0.0
    %1142 = vmatpush2.xpose.msra.mxu0 0.0
    %1143 = vmatprep.subr.mxu0 0.0
    %1144 = vmatpush2.xpose.msra.mxu0 0.0
    %1145 = vmatprep.subr.mxu0 0.0
    %1146 = vmatpush2.xpose.msra.mxu0 0.0
    %1147 = vmatprep.subr.mxu0 0.0
    %1148 = vmatpush2.xpose.msra.mxu0 0.0
    %1149 = vmatprep.subr.mxu0 0.0
    %1150 = vmatpush2.xpose.msra.mxu0 0.0
    %1151 = vmatprep.subr.mxu0 0.0
    %1152 = vmatpush2.xpose.msra.mxu0 0.0
    %1153 = vmatprep.subr.mxu0 0.0
    %1154 = vmatpush2.xpose.msra.mxu0 0.0
    %1155 = vmatprep.subr.mxu0 0.0
    %1156 = vmatpush2.xpose.msra.mxu0 0.0
    %1157 = vmatprep.subr.mxu0 0.0
    %1158 = vmatpush2.xpose.msra.mxu0 0.0
    %1159 = vmatprep.subr.mxu0 0.0
    %1160 = vmatpush2.xpose.msra.mxu0 0.0
    %1161 = vmatprep.subr.mxu0 0.0
    %1162 = vmatpush2.xpose.msra.mxu0 0.0
    %1163 = vmatprep.mubr.f32.mxu0 0.0
    %1164 = vmatmul.mubr.f32.gmra.mxu0 %v1095
    %v1165 = vpop.f32.mrf.mxu0
    %v1166 = vadd.f32 0.0, %v1165
    %v1167 = vpop.f32.mrf.mxu0
    %1168 = vdwg.mxu0
    %v1169 = vsel %vm340, %v1088, -inf
    %v1170 = vsel %vm340, %v1166, -inf
    %v1171 = vsel %vm185, %v1169, -inf
    %1172 = vmax.xlane.f32.xlu0 %v1171
    %v1173 = vpop.xlane.xlu0 %1172
    %v1174 = vsel %vm185, %v1170, -inf
    %1175 = vmax.xlane.f32.xlu0 %v1174
    %v1176 = vpop.xlane.xlu0 %1175
    %v1177 = vsub.f32 %v1169, %v1173
    %v1178 = vsub.f32 %v1170, %v1176
    %v1179 = vmul.f32 %v1177, 1.442695
    %v1180 = vpow.pop %v1179
    %v1181 = vmul.f32 %v1178, 1.442695
    %v1182 = vpow.pop %v1181
    %v1183 = vsel %vm185, %v1180, 0.0
    %1184 = vadd.xlane.f32.xlu0 %v1183
    %v1185 = vpop.xlane.xlu0 %1184
    %v1186 = vsel %vm185, %v1182, 0.0
    %1187 = vadd.xlane.f32.xlu0 %v1186
    %v1188 = vpop.xlane.xlu0 %1187
    %v1189 = vrcp.pop %v1185
    %v1190 = vmul.f32 %v1180, %v1189
    %v1191 = vrcp.pop %v1188
    %v1192 = vmul.f32 %v1182, %v1191
    %1193 = vrot.lane.b32.xlu0 %v167, 48
    %v1194 = vpop.permute.xlu0 %1193
    %v1197 = vsel %vm185, %v1190, 0
    %1199 = vmatprep.subr.mxu0 0.0
    %1200 = vmatpush1.msra.mxu0 0.0
    %1201 = vmatprep.subr.mxu0 0.0
    %1202 = vmatpush1.msra.mxu0 0.0
    %1203 = vmatprep.subr.mxu0 0.0
    %1204 = vmatpush1.msra.mxu0 0.0
    %1205 = vmatprep.subr.mxu0 0.0
    %1206 = vmatpush1.msra.mxu0 0.0
    %1207 = vmatprep.subr.mxu0 0.0
    %1208 = vmatpush1.msra.mxu0 0.0
    %1209 = vmatprep.subr.mxu0 0.0
    %1210 = vmatpush1.msra.mxu0 0.0
    %1211 = vmatprep.subr.mxu0 0.0
    %1212 = vmatpush1.msra.mxu0 0.0
    %1213 = vmatprep.subr.mxu0 0.0
    %1214 = vmatpush1.msra.mxu0 0.0
    %1215 = vmatprep.subr.mxu0 0.0
    %1216 = vmatpush1.msra.mxu0 0.0
    %1217 = vmatprep.subr.mxu0 0.0
    %1218 = vmatpush1.msra.mxu0 0.0
    %1219 = vmatprep.subr.mxu0 0.0
    %1220 = vmatpush1.msra.mxu0 0.0
    %1221 = vmatprep.subr.mxu0 0.0
    %1222 = vmatpush1.msra.mxu0 0.0
    %1223 = vmatprep.subr.mxu0 0.0
    %1224 = vmatpush1.msra.mxu0 0.0
    %1225 = vmatprep.subr.mxu0 0.0
    %1226 = vmatpush1.msra.mxu0 0.0
    %1227 = vmatprep.subr.mxu0 0.0
    %1228 = vmatpush1.msra.mxu0 0.0
    %1229 = vmatprep.subr.mxu0 0.0
    %1230 = vmatpush1.msra.mxu0 %v1194
    %1231 = vmatprep.subr.mxu0 0.0
    %1232 = vmatpush2.msra.mxu0 0.0
    %1233 = vmatprep.subr.mxu0 0.0
    %1234 = vmatpush2.msra.mxu0 0.0
    %1235 = vmatprep.subr.mxu0 0.0
    %1236 = vmatpush2.msra.mxu0 0.0
    %1237 = vmatprep.subr.mxu0 0.0
    %1238 = vmatpush2.msra.mxu0 0.0
    %1239 = vmatprep.subr.mxu0 0.0
    %1240 = vmatpush2.msra.mxu0 0.0
    %1241 = vmatprep.subr.mxu0 0.0
    %1242 = vmatpush2.msra.mxu0 0.0
    %1243 = vmatprep.subr.mxu0 0.0
    %1244 = vmatpush2.msra.mxu0 0.0
    %1245 = vmatprep.subr.mxu0 0.0
    %1246 = vmatpush2.msra.mxu0 0.0
    %1247 = vmatprep.subr.mxu0 0.0
    %1248 = vmatpush2.msra.mxu0 0.0
    %1249 = vmatprep.subr.mxu0 0.0
    %1250 = vmatpush2.msra.mxu0 0.0
    %1251 = vmatprep.subr.mxu0 0.0
    %1252 = vmatpush2.msra.mxu0 0.0
    %1253 = vmatprep.subr.mxu0 0.0
    %1254 = vmatpush2.msra.mxu0 0.0
    %1255 = vmatprep.subr.mxu0 0.0
    %1256 = vmatpush2.msra.mxu0 0.0
    %1257 = vmatprep.subr.mxu0 0.0
    %1258 = vmatpush2.msra.mxu0 0.0
    %1259 = vmatprep.subr.mxu0 0.0
    %1260 = vmatpush2.msra.mxu0 0.0
    %1261 = vmatprep.subr.mxu0 0.0
    %1262 = vmatpush2.msra.mxu0 0.0
    %1263 = vmatprep.mubr.f32.mxu0 0.0
    %1264 = vmatmul.mubr.f32.gmra.mxu0 %v1197
    %v1265 = vpop.f32.mrf.mxu0
    %v1266 = vadd.f32 0.0, %v1265
    %v1267 = vpop.f32.mrf.mxu0
    %1268 = vdwg.mxu0
    %1269 = vrot.lane.b32.xlu0 %v172, 48
    %v1270 = vpop.permute.xlu0 %1269
    %v1273 = vsel %vm185, %v1192, 0
    %1275 = vmatprep.subr.mxu0 0.0
    %1276 = vmatpush1.msra.mxu0 0.0
    %1277 = vmatprep.subr.mxu0 0.0
    %1278 = vmatpush1.msra.mxu0 0.0
    %1279 = vmatprep.subr.mxu0 0.0
    %1280 = vmatpush1.msra.mxu0 0.0
    %1281 = vmatprep.subr.mxu0 0.0
    %1282 = vmatpush1.msra.mxu0 0.0
    %1283 = vmatprep.subr.mxu0 0.0
    %1284 = vmatpush1.msra.mxu0 0.0
    %1285 = vmatprep.subr.mxu0 0.0
    %1286 = vmatpush1.msra.mxu0 0.0
    %1287 = vmatprep.subr.mxu0 0.0
    %1288 = vmatpush1.msra.mxu0 0.0
    %1289 = vmatprep.subr.mxu0 0.0
    %1290 = vmatpush1.msra.mxu0 0.0
    %1291 = vmatprep.subr.mxu0 0.0
    %1292 = vmatpush1.msra.mxu0 0.0
    %1293 = vmatprep.subr.mxu0 0.0
    %1294 = vmatpush1.msra.mxu0 0.0
    %1295 = vmatprep.subr.mxu0 0.0
    %1296 = vmatpush1.msra.mxu0 0.0
    %1297 = vmatprep.subr.mxu0 0.0
    %1298 = vmatpush1.msra.mxu0 0.0
    %1299 = vmatprep.subr.mxu0 0.0
    %1300 = vmatpush1.msra.mxu0 0.0
    %1301 = vmatprep.subr.mxu0 0.0
    %1302 = vmatpush1.msra.mxu0 0.0
    %1303 = vmatprep.subr.mxu0 0.0
    %1304 = vmatpush1.msra.mxu0 0.0
    %1305 = vmatprep.subr.mxu0 0.0
    %1306 = vmatpush1.msra.mxu0 %v1270
    %1307 = vmatprep.subr.mxu0 0.0
    %1308 = vmatpush2.msra.mxu0 0.0
    %1309 = vmatprep.subr.mxu0 0.0
    %1310 = vmatpush2.msra.mxu0 0.0
    %1311 = vmatprep.subr.mxu0 0.0
    %1312 = vmatpush2.msra.mxu0 0.0
    %1313 = vmatprep.subr.mxu0 0.0
    %1314 = vmatpush2.msra.mxu0 0.0
    %1315 = vmatprep.subr.mxu0 0.0
    %1316 = vmatpush2.msra.mxu0 0.0
    %1317 = vmatprep.subr.mxu0 0.0
    %1318 = vmatpush2.msra.mxu0 0.0
    %1319 = vmatprep.subr.mxu0 0.0
    %1320 = vmatpush2.msra.mxu0 0.0
    %1321 = vmatprep.subr.mxu0 0.0
    %1322 = vmatpush2.msra.mxu0 0.0
    %1323 = vmatprep.subr.mxu0 0.0
    %1324 = vmatpush2.msra.mxu0 0.0
    %1325 = vmatprep.subr.mxu0 0.0
    %1326 = vmatpush2.msra.mxu0 0.0
    %1327 = vmatprep.subr.mxu0 0.0
    %1328 = vmatpush2.msra.mxu0 0.0
    %1329 = vmatprep.subr.mxu0 0.0
    %1330 = vmatpush2.msra.mxu0 0.0
    %1331 = vmatprep.subr.mxu0 0.0
    %1332 = vmatpush2.msra.mxu0 0.0
    %1333 = vmatprep.subr.mxu0 0.0
    %1334 = vmatpush2.msra.mxu0 0.0
    %1335 = vmatprep.subr.mxu0 0.0
    %1336 = vmatpush2.msra.mxu0 0.0
    %1337 = vmatprep.subr.mxu0 0.0
    %1338 = vmatpush2.msra.mxu0 0.0
    %1339 = vmatprep.mubr.f32.mxu0 0.0
    %1340 = vmatmul.mubr.f32.gmra.mxu0 %v1273
    %v1341 = vpop.f32.mrf.mxu0
    %v1342 = vadd.f32 0.0, %v1341
    %v1343 = vpop.f32.mrf.mxu0
    %1344 = vdwg.mxu0
    %v1345 = vld [vmem:[%s4 + $0x10] sm:$0xff]
    %v1347 = vsel %vm185, %v1266, 0
    %v1350 = vsel %vm185, %v1342, 0
    %1352 = vmatprep.subr.mxu0 0.0
    %1353 = vmatpush1.msra.mxu0 0.0
    %1354 = vmatprep.subr.mxu0 0.0
    %1355 = vmatpush1.msra.mxu0 0.0
    %1356 = vmatprep.subr.mxu0 0.0
    %1357 = vmatpush1.msra.mxu0 0.0
    %1358 = vmatprep.subr.mxu0 0.0
    %1359 = vmatpush1.msra.mxu0 0.0
    %1360 = vmatprep.subr.mxu0 0.0
    %1361 = vmatpush1.msra.mxu0 0.0
    %1362 = vmatprep.subr.mxu0 0.0
    %1363 = vmatpush1.msra.mxu0 0.0
    %1364 = vmatprep.subr.mxu0 0.0
    %1365 = vmatpush1.msra.mxu0 0.0
    %1366 = vmatprep.subr.mxu0 0.0
    %1367 = vmatpush1.msra.mxu0 0.0
    %1368 = vmatprep.subr.mxu0 0.0
    %1369 = vmatpush1.msra.mxu0 0.0
    %1370 = vmatprep.subr.mxu0 0.0
    %1371 = vmatpush1.msra.mxu0 0.0
    %1372 = vmatprep.subr.mxu0 0.0
    %1373 = vmatpush1.msra.mxu0 0.0
    %1374 = vmatprep.subr.mxu0 0.0
    %1375 = vmatpush1.msra.mxu0 0.0
    %1376 = vmatprep.subr.mxu0 0.0
    %1377 = vmatpush1.msra.mxu0 0.0
    %1378 = vmatprep.subr.mxu0 0.0
    %1379 = vmatpush1.msra.mxu0 0.0
    %1380 = vmatprep.subr.mxu0 0.0
    %1381 = vmatpush1.msra.mxu0 0.0
    %1382 = vmatprep.subr.mxu0 0.0
    %1383 = vmatpush1.msra.mxu0 %v1345
    %1384 = vmatprep.subr.mxu0 0.0
    %1385 = vmatpush2.msra.mxu0 0.0
    %1386 = vmatprep.subr.mxu0 0.0
    %1387 = vmatpush2.msra.mxu0 0.0
    %1388 = vmatprep.subr.mxu0 0.0
    %1389 = vmatpush2.msra.mxu0 0.0
    %1390 = vmatprep.subr.mxu0 0.0
    %1391 = vmatpush2.msra.mxu0 0.0
    %1392 = vmatprep.subr.mxu0 0.0
    %1393 = vmatpush2.msra.mxu0 0.0
    %1394 = vmatprep.subr.mxu0 0.0
    %1395 = vmatpush2.msra.mxu0 0.0
    %1396 = vmatprep.subr.mxu0 0.0
    %1397 = vmatpush2.msra.mxu0 0.0
    %1398 = vmatprep.subr.mxu0 0.0
    %1399 = vmatpush2.msra.mxu0 0.0
    %1400 = vmatprep.subr.mxu0 0.0
    %1401 = vmatpush2.msra.mxu0 0.0
    %1402 = vmatprep.subr.mxu0 0.0
    %1403 = vmatpush2.msra.mxu0 0.0
    %1404 = vmatprep.subr.mxu0 0.0
    %1405 = vmatpush2.msra.mxu0 0.0
    %1406 = vmatprep.subr.mxu0 0.0
    %1407 = vmatpush2.msra.mxu0 0.0
    %1408 = vmatprep.subr.mxu0 0.0
    %1409 = vmatpush2.msra.mxu0 0.0
    %1410 = vmatprep.subr.mxu0 0.0
    %1411 = vmatpush2.msra.mxu0 0.0
    %1412 = vmatprep.subr.mxu0 0.0
    %1413 = vmatpush2.msra.mxu0 0.0
    %1414 = vmatprep.subr.mxu0 0.0
    %1415 = vmatpush2.msra.mxu0 0.0
    %1416 = vmatprep.mubr.f32.mxu0 0.0
    %1417 = vmatmul.mubr.f32.gmra.mxu0 %v1347
    %v1418 = vpop.f32.mrf.mxu0
    %v1419 = vadd.f32 0.0, %v1418
    %v1420 = vpop.f32.mrf.mxu0
    %1421 = vmatprep.mubr.f32.mxu0 0.0
    %1422 = vmatmul.mubr.f32.gmra.mxu0 %v1350
    %v1423 = vpop.f32.mrf.mxu0
    %v1424 = vadd.f32 0.0, %v1423
    %v1425 = vpop.f32.mrf.mxu0
    %1426 = vdwg.mxu0
    %v1427 = vadd.f32 %v1005, %v1419
    %v1428 = vadd.f32 %v1010, %v1424
    %1429 = vrot.lane.b32.xlu0 %v180, 104
    %v1430 = vpop.permute.xlu0 %1429
    %1431 = vrot.lane.b32.xlu0 %v167, 72
    %v1432 = vpop.permute.xlu0 %1431
    %v1433 = vsel %vm185, %v1430, 0
    %v1435 = vsel %vm185, %v1432, 0
    %1437 = vmatprep.subr.mxu0 0.0
    %1438 = vmatpush1.xpose.msra.mxu0 0.0
    %1439 = vmatprep.subr.mxu0 0.0
    %1440 = vmatpush1.xpose.msra.mxu0 0.0
    %1441 = vmatprep.subr.mxu0 0.0
    %1442 = vmatpush1.xpose.msra.mxu0 0.0
    %1443 = vmatprep.subr.mxu0 0.0
    %1444 = vmatpush1.xpose.msra.mxu0 0.0
    %1445 = vmatprep.subr.mxu0 0.0
    %1446 = vmatpush1.xpose.msra.mxu0 0.0
    %1447 = vmatprep.subr.mxu0 0.0
    %1448 = vmatpush1.xpose.msra.mxu0 0.0
    %1449 = vmatprep.subr.mxu0 0.0
    %1450 = vmatpush1.xpose.msra.mxu0 0.0
    %1451 = vmatprep.subr.mxu0 0.0
    %1452 = vmatpush1.xpose.msra.mxu0 0.0
    %1453 = vmatprep.subr.mxu0 0.0
    %1454 = vmatpush1.xpose.msra.mxu0 0.0
    %1455 = vmatprep.subr.mxu0 0.0
    %1456 = vmatpush1.xpose.msra.mxu0 0.0
    %1457 = vmatprep.subr.mxu0 0.0
    %1458 = vmatpush1.xpose.msra.mxu0 0.0
    %1459 = vmatprep.subr.mxu0 0.0
    %1460 = vmatpush1.xpose.msra.mxu0 0.0
    %1461 = vmatprep.subr.mxu0 0.0
    %1462 = vmatpush1.xpose.msra.mxu0 0.0
    %1463 = vmatprep.subr.mxu0 0.0
    %1464 = vmatpush1.xpose.msra.mxu0 0.0
    %1465 = vmatprep.subr.mxu0 0.0
    %1466 = vmatpush1.xpose.msra.mxu0 0.0
    %1467 = vmatprep.subr.mxu0 0.0
    %1468 = vmatpush1.xpose.msra.mxu0 %v1435
    %1469 = vmatprep.subr.mxu0 0.0
    %1470 = vmatpush2.xpose.msra.mxu0 0.0
    %1471 = vmatprep.subr.mxu0 0.0
    %1472 = vmatpush2.xpose.msra.mxu0 0.0
    %1473 = vmatprep.subr.mxu0 0.0
    %1474 = vmatpush2.xpose.msra.mxu0 0.0
    %1475 = vmatprep.subr.mxu0 0.0
    %1476 = vmatpush2.xpose.msra.mxu0 0.0
    %1477 = vmatprep.subr.mxu0 0.0
    %1478 = vmatpush2.xpose.msra.mxu0 0.0
    %1479 = vmatprep.subr.mxu0 0.0
    %1480 = vmatpush2.xpose.msra.mxu0 0.0
    %1481 = vmatprep.subr.mxu0 0.0
    %1482 = vmatpush2.xpose.msra.mxu0 0.0
    %1483 = vmatprep.subr.mxu0 0.0
    %1484 = vmatpush2.xpose.msra.mxu0 0.0
    %1485 = vmatprep.subr.mxu0 0.0
    %1486 = vmatpush2.xpose.msra.mxu0 0.0
    %1487 = vmatprep.subr.mxu0 0.0
    %1488 = vmatpush2.xpose.msra.mxu0 0.0
    %1489 = vmatprep.subr.mxu0 0.0
    %1490 = vmatpush2.xpose.msra.mxu0 0.0
    %1491 = vmatprep.subr.mxu0 0.0
    %1492 = vmatpush2.xpose.msra.mxu0 0.0
    %1493 = vmatprep.subr.mxu0 0.0
    %1494 = vmatpush2.xpose.msra.mxu0 0.0
    %1495 = vmatprep.subr.mxu0 0.0
    %1496 = vmatpush2.xpose.msra.mxu0 0.0
    %1497 = vmatprep.subr.mxu0 0.0
    %1498 = vmatpush2.xpose.msra.mxu0 0.0
    %1499 = vmatprep.subr.mxu0 0.0
    %1500 = vmatpush2.xpose.msra.mxu0 0.0
    %1501 = vmatprep.mubr.f32.mxu0 0.0
    %1502 = vmatmul.mubr.f32.gmra.mxu0 %v1433
    %v1503 = vpop.f32.mrf.mxu0
    %v1504 = vadd.f32 0.0, %v1503
    %v1505 = vpop.f32.mrf.mxu0
    %1506 = vdwg.mxu0
    %1507 = vrot.lane.b32.xlu0 %v181, 104
    %v1508 = vpop.permute.xlu0 %1507
    %1509 = vrot.lane.b32.xlu0 %v172, 72
    %v1510 = vpop.permute.xlu0 %1509
    %v1511 = vsel %vm185, %v1508, 0
    %v1513 = vsel %vm185, %v1510, 0
    %1515 = vmatprep.subr.mxu0 0.0
    %1516 = vmatpush1.xpose.msra.mxu0 0.0
    %1517 = vmatprep.subr.mxu0 0.0
    %1518 = vmatpush1.xpose.msra.mxu0 0.0
    %1519 = vmatprep.subr.mxu0 0.0
    %1520 = vmatpush1.xpose.msra.mxu0 0.0
    %1521 = vmatprep.subr.mxu0 0.0
    %1522 = vmatpush1.xpose.msra.mxu0 0.0
    %1523 = vmatprep.subr.mxu0 0.0
    %1524 = vmatpush1.xpose.msra.mxu0 0.0
    %1525 = vmatprep.subr.mxu0 0.0
    %1526 = vmatpush1.xpose.msra.mxu0 0.0
    %1527 = vmatprep.subr.mxu0 0.0
    %1528 = vmatpush1.xpose.msra.mxu0 0.0
    %1529 = vmatprep.subr.mxu0 0.0
    %1530 = vmatpush1.xpose.msra.mxu0 0.0
    %1531 = vmatprep.subr.mxu0 0.0
    %1532 = vmatpush1.xpose.msra.mxu0 0.0
    %1533 = vmatprep.subr.mxu0 0.0
    %1534 = vmatpush1.xpose.msra.mxu0 0.0
    %1535 = vmatprep.subr.mxu0 0.0
    %1536 = vmatpush1.xpose.msra.mxu0 0.0
    %1537 = vmatprep.subr.mxu0 0.0
    %1538 = vmatpush1.xpose.msra.mxu0 0.0
    %1539 = vmatprep.subr.mxu0 0.0
    %1540 = vmatpush1.xpose.msra.mxu0 0.0
    %1541 = vmatprep.subr.mxu0 0.0
    %1542 = vmatpush1.xpose.msra.mxu0 0.0
    %1543 = vmatprep.subr.mxu0 0.0
    %1544 = vmatpush1.xpose.msra.mxu0 0.0
    %1545 = vmatprep.subr.mxu0 0.0
    %1546 = vmatpush1.xpose.msra.mxu0 %v1513
    %1547 = vmatprep.subr.mxu0 0.0
    %1548 = vmatpush2.xpose.msra.mxu0 0.0
    %1549 = vmatprep.subr.mxu0 0.0
    %1550 = vmatpush2.xpose.msra.mxu0 0.0
    %1551 = vmatprep.subr.mxu0 0.0
    %1552 = vmatpush2.xpose.msra.mxu0 0.0
    %1553 = vmatprep.subr.mxu0 0.0
    %1554 = vmatpush2.xpose.msra.mxu0 0.0
    %1555 = vmatprep.subr.mxu0 0.0
    %1556 = vmatpush2.xpose.msra.mxu0 0.0
    %1557 = vmatprep.subr.mxu0 0.0
    %1558 = vmatpush2.xpose.msra.mxu0 0.0
    %1559 = vmatprep.subr.mxu0 0.0
    %1560 = vmatpush2.xpose.msra.mxu0 0.0
    %1561 = vmatprep.subr.mxu0 0.0
    %1562 = vmatpush2.xpose.msra.mxu0 0.0
    %1563 = vmatprep.subr.mxu0 0.0
    %1564 = vmatpush2.xpose.msra.mxu0 0.0
    %1565 = vmatprep.subr.mxu0 0.0
    %1566 = vmatpush2.xpose.msra.mxu0 0.0
    %1567 = vmatprep.subr.mxu0 0.0
    %1568 = vmatpush2.xpose.msra.mxu0 0.0
    %1569 = vmatprep.subr.mxu0 0.0
    %1570 = vmatpush2.xpose.msra.mxu0 0.0
    %1571 = vmatprep.subr.mxu0 0.0
    %1572 = vmatpush2.xpose.msra.mxu0 0.0
    %1573 = vmatprep.subr.mxu0 0.0
    %1574 = vmatpush2.xpose.msra.mxu0 0.0
    %1575 = vmatprep.subr.mxu0 0.0
    %1576 = vmatpush2.xpose.msra.mxu0 0.0
    %1577 = vmatprep.subr.mxu0 0.0
    %1578 = vmatpush2.xpose.msra.mxu0 0.0
    %1579 = vmatprep.mubr.f32.mxu0 0.0
    %1580 = vmatmul.mubr.f32.gmra.mxu0 %v1511
    %v1581 = vpop.f32.mrf.mxu0
    %v1582 = vadd.f32 0.0, %v1581
    %v1583 = vpop.f32.mrf.mxu0
    %1584 = vdwg.mxu0
    %v1585 = vsel %vm340, %v1504, -inf
    %v1586 = vsel %vm340, %v1582, -inf
    %v1587 = vsel %vm185, %v1585, -inf
    %1588 = vmax.xlane.f32.xlu0 %v1587
    %v1589 = vpop.xlane.xlu0 %1588
    %v1590 = vsel %vm185, %v1586, -inf
    %1591 = vmax.xlane.f32.xlu0 %v1590
    %v1592 = vpop.xlane.xlu0 %1591
    %v1593 = vsub.f32 %v1585, %v1589
    %v1594 = vsub.f32 %v1586, %v1592
    %v1595 = vmul.f32 %v1593, 1.442695
    %v1596 = vpow.pop %v1595
    %v1597 = vmul.f32 %v1594, 1.442695
    %v1598 = vpow.pop %v1597
    %v1599 = vsel %vm185, %v1596, 0.0
    %1600 = vadd.xlane.f32.xlu0 %v1599
    %v1601 = vpop.xlane.xlu0 %1600
    %v1602 = vsel %vm185, %v1598, 0.0
    %1603 = vadd.xlane.f32.xlu0 %v1602
    %v1604 = vpop.xlane.xlu0 %1603
    %v1605 = vrcp.pop %v1601
    %v1606 = vmul.f32 %v1596, %v1605
    %v1607 = vrcp.pop %v1604
    %v1608 = vmul.f32 %v1598, %v1607
    %1609 = vrot.lane.b32.xlu0 %v167, 40
    %v1610 = vpop.permute.xlu0 %1609
    %v1613 = vsel %vm185, %v1606, 0
    %1615 = vmatprep.subr.mxu0 0.0
    %1616 = vmatpush1.msra.mxu0 0.0
    %1617 = vmatprep.subr.mxu0 0.0
    %1618 = vmatpush1.msra.mxu0 0.0
    %1619 = vmatprep.subr.mxu0 0.0
    %1620 = vmatpush1.msra.mxu0 0.0
    %1621 = vmatprep.subr.mxu0 0.0
    %1622 = vmatpush1.msra.mxu0 0.0
    %1623 = vmatprep.subr.mxu0 0.0
    %1624 = vmatpush1.msra.mxu0 0.0
    %1625 = vmatprep.subr.mxu0 0.0
    %1626 = vmatpush1.msra.mxu0 0.0
    %1627 = vmatprep.subr.mxu0 0.0
    %1628 = vmatpush1.msra.mxu0 0.0
    %1629 = vmatprep.subr.mxu0 0.0
    %1630 = vmatpush1.msra.mxu0 0.0
    %1631 = vmatprep.subr.mxu0 0.0
    %1632 = vmatpush1.msra.mxu0 0.0
    %1633 = vmatprep.subr.mxu0 0.0
    %1634 = vmatpush1.msra.mxu0 0.0
    %1635 = vmatprep.subr.mxu0 0.0
    %1636 = vmatpush1.msra.mxu0 0.0
    %1637 = vmatprep.subr.mxu0 0.0
    %1638 = vmatpush1.msra.mxu0 0.0
    %1639 = vmatprep.subr.mxu0 0.0
    %1640 = vmatpush1.msra.mxu0 0.0
    %1641 = vmatprep.subr.mxu0 0.0
    %1642 = vmatpush1.msra.mxu0 0.0
    %1643 = vmatprep.subr.mxu0 0.0
    %1644 = vmatpush1.msra.mxu0 0.0
    %1645 = vmatprep.subr.mxu0 0.0
    %1646 = vmatpush1.msra.mxu0 %v1610
    %1647 = vmatprep.subr.mxu0 0.0
    %1648 = vmatpush2.msra.mxu0 0.0
    %1649 = vmatprep.subr.mxu0 0.0
    %1650 = vmatpush2.msra.mxu0 0.0
    %1651 = vmatprep.subr.mxu0 0.0
    %1652 = vmatpush2.msra.mxu0 0.0
    %1653 = vmatprep.subr.mxu0 0.0
    %1654 = vmatpush2.msra.mxu0 0.0
    %1655 = vmatprep.subr.mxu0 0.0
    %1656 = vmatpush2.msra.mxu0 0.0
    %1657 = vmatprep.subr.mxu0 0.0
    %1658 = vmatpush2.msra.mxu0 0.0
    %1659 = vmatprep.subr.mxu0 0.0
    %1660 = vmatpush2.msra.mxu0 0.0
    %1661 = vmatprep.subr.mxu0 0.0
    %1662 = vmatpush2.msra.mxu0 0.0
    %1663 = vmatprep.subr.mxu0 0.0
    %1664 = vmatpush2.msra.mxu0 0.0
    %1665 = vmatprep.subr.mxu0 0.0
    %1666 = vmatpush2.msra.mxu0 0.0
    %1667 = vmatprep.subr.mxu0 0.0
    %1668 = vmatpush2.msra.mxu0 0.0
    %1669 = vmatprep.subr.mxu0 0.0
    %1670 = vmatpush2.msra.mxu0 0.0
    %1671 = vmatprep.subr.mxu0 0.0
    %1672 = vmatpush2.msra.mxu0 0.0
    %1673 = vmatprep.subr.mxu0 0.0
    %1674 = vmatpush2.msra.mxu0 0.0
    %1675 = vmatprep.subr.mxu0 0.0
    %1676 = vmatpush2.msra.mxu0 0.0
    %1677 = vmatprep.subr.mxu0 0.0
    %1678 = vmatpush2.msra.mxu0 0.0
    %1679 = vmatprep.mubr.f32.mxu0 0.0
    %1680 = vmatmul.mubr.f32.gmra.mxu0 %v1613
    %v1681 = vpop.f32.mrf.mxu0
    %v1682 = vadd.f32 0.0, %v1681
    %v1683 = vpop.f32.mrf.mxu0
    %1684 = vdwg.mxu0
    %1685 = vrot.lane.b32.xlu0 %v172, 40
    %v1686 = vpop.permute.xlu0 %1685
    %v1689 = vsel %vm185, %v1608, 0
    %1691 = vmatprep.subr.mxu0 0.0
    %1692 = vmatpush1.msra.mxu0 0.0
    %1693 = vmatprep.subr.mxu0 0.0
    %1694 = vmatpush1.msra.mxu0 0.0
    %1695 = vmatprep.subr.mxu0 0.0
    %1696 = vmatpush1.msra.mxu0 0.0
    %1697 = vmatprep.subr.mxu0 0.0
    %1698 = vmatpush1.msra.mxu0 0.0
    %1699 = vmatprep.subr.mxu0 0.0
    %1700 = vmatpush1.msra.mxu0 0.0
    %1701 = vmatprep.subr.mxu0 0.0
    %1702 = vmatpush1.msra.mxu0 0.0
    %1703 = vmatprep.subr.mxu0 0.0
    %1704 = vmatpush1.msra.mxu0 0.0
    %1705 = vmatprep.subr.mxu0 0.0
    %1706 = vmatpush1.msra.mxu0 0.0
    %1707 = vmatprep.subr.mxu0 0.0
    %1708 = vmatpush1.msra.mxu0 0.0
    %1709 = vmatprep.subr.mxu0 0.0
    %1710 = vmatpush1.msra.mxu0 0.0
    %1711 = vmatprep.subr.mxu0 0.0
    %1712 = vmatpush1.msra.mxu0 0.0
    %1713 = vmatprep.subr.mxu0 0.0
    %1714 = vmatpush1.msra.mxu0 0.0
    %1715 = vmatprep.subr.mxu0 0.0
    %1716 = vmatpush1.msra.mxu0 0.0
    %1717 = vmatprep.subr.mxu0 0.0
    %1718 = vmatpush1.msra.mxu0 0.0
    %1719 = vmatprep.subr.mxu0 0.0
    %1720 = vmatpush1.msra.mxu0 0.0
    %1721 = vmatprep.subr.mxu0 0.0
    %1722 = vmatpush1.msra.mxu0 %v1686
    %1723 = vmatprep.subr.mxu0 0.0
    %1724 = vmatpush2.msra.mxu0 0.0
    %1725 = vmatprep.subr.mxu0 0.0
    %1726 = vmatpush2.msra.mxu0 0.0
    %1727 = vmatprep.subr.mxu0 0.0
    %1728 = vmatpush2.msra.mxu0 0.0
    %1729 = vmatprep.subr.mxu0 0.0
    %1730 = vmatpush2.msra.mxu0 0.0
    %1731 = vmatprep.subr.mxu0 0.0
    %1732 = vmatpush2.msra.mxu0 0.0
    %1733 = vmatprep.subr.mxu0 0.0
    %1734 = vmatpush2.msra.mxu0 0.0
    %1735 = vmatprep.subr.mxu0 0.0
    %1736 = vmatpush2.msra.mxu0 0.0
    %1737 = vmatprep.subr.mxu0 0.0
    %1738 = vmatpush2.msra.mxu0 0.0
    %1739 = vmatprep.subr.mxu0 0.0
    %1740 = vmatpush2.msra.mxu0 0.0
    %1741 = vmatprep.subr.mxu0 0.0
    %1742 = vmatpush2.msra.mxu0 0.0
    %1743 = vmatprep.subr.mxu0 0.0
    %1744 = vmatpush2.msra.mxu0 0.0
    %1745 = vmatprep.subr.mxu0 0.0
    %1746 = vmatpush2.msra.mxu0 0.0
    %1747 = vmatprep.subr.mxu0 0.0
    %1748 = vmatpush2.msra.mxu0 0.0
    %1749 = vmatprep.subr.mxu0 0.0
    %1750 = vmatpush2.msra.mxu0 0.0
    %1751 = vmatprep.subr.mxu0 0.0
    %1752 = vmatpush2.msra.mxu0 0.0
    %1753 = vmatprep.subr.mxu0 0.0
    %1754 = vmatpush2.msra.mxu0 0.0
    %1755 = vmatprep.mubr.f32.mxu0 0.0
    %1756 = vmatmul.mubr.f32.gmra.mxu0 %v1689
    %v1757 = vpop.f32.mrf.mxu0
    %v1758 = vadd.f32 0.0, %v1757
    %v1759 = vpop.f32.mrf.mxu0
    %1760 = vdwg.mxu0
    %v1761 = vld [vmem:[%s4 + $0x18] sm:$0xff]
    %v1763 = vsel %vm185, %v1682, 0
    %v1766 = vsel %vm185, %v1758, 0
    %1768 = vmatprep.subr.mxu0 0.0
    %1769 = vmatpush1.msra.mxu0 0.0
    %1770 = vmatprep.subr.mxu0 0.0
    %1771 = vmatpush1.msra.mxu0 0.0
    %1772 = vmatprep.subr.mxu0 0.0
    %1773 = vmatpush1.msra.mxu0 0.0
    %1774 = vmatprep.subr.mxu0 0.0
    %1775 = vmatpush1.msra.mxu0 0.0
    %1776 = vmatprep.subr.mxu0 0.0
    %1777 = vmatpush1.msra.mxu0 0.0
    %1778 = vmatprep.subr.mxu0 0.0
    %1779 = vmatpush1.msra.mxu0 0.0
    %1780 = vmatprep.subr.mxu0 0.0
    %1781 = vmatpush1.msra.mxu0 0.0
    %1782 = vmatprep.subr.mxu0 0.0
    %1783 = vmatpush1.msra.mxu0 0.0
    %1784 = vmatprep.subr.mxu0 0.0
    %1785 = vmatpush1.msra.mxu0 0.0
    %1786 = vmatprep.subr.mxu0 0.0
    %1787 = vmatpush1.msra.mxu0 0.0
    %1788 = vmatprep.subr.mxu0 0.0
    %1789 = vmatpush1.msra.mxu0 0.0
    %1790 = vmatprep.subr.mxu0 0.0
    %1791 = vmatpush1.msra.mxu0 0.0
    %1792 = vmatprep.subr.mxu0 0.0
    %1793 = vmatpush1.msra.mxu0 0.0
    %1794 = vmatprep.subr.mxu0 0.0
    %1795 = vmatpush1.msra.mxu0 0.0
    %1796 = vmatprep.subr.mxu0 0.0
    %1797 = vmatpush1.msra.mxu0 0.0
    %1798 = vmatprep.subr.mxu0 0.0
    %1799 = vmatpush1.msra.mxu0 %v1761
    %1800 = vmatprep.subr.mxu0 0.0
    %1801 = vmatpush2.msra.mxu0 0.0
    %1802 = vmatprep.subr.mxu0 0.0
    %1803 = vmatpush2.msra.mxu0 0.0
    %1804 = vmatprep.subr.mxu0 0.0
    %1805 = vmatpush2.msra.mxu0 0.0
    %1806 = vmatprep.subr.mxu0 0.0
    %1807 = vmatpush2.msra.mxu0 0.0
    %1808 = vmatprep.subr.mxu0 0.0
    %1809 = vmatpush2.msra.mxu0 0.0
    %1810 = vmatprep.subr.mxu0 0.0
    %1811 = vmatpush2.msra.mxu0 0.0
    %1812 = vmatprep.subr.mxu0 0.0
    %1813 = vmatpush2.msra.mxu0 0.0
    %1814 = vmatprep.subr.mxu0 0.0
    %1815 = vmatpush2.msra.mxu0 0.0
    %1816 = vmatprep.subr.mxu0 0.0
    %1817 = vmatpush2.msra.mxu0 0.0
    %1818 = vmatprep.subr.mxu0 0.0
    %1819 = vmatpush2.msra.mxu0 0.0
    %1820 = vmatprep.subr.mxu0 0.0
    %1821 = vmatpush2.msra.mxu0 0.0
    %1822 = vmatprep.subr.mxu0 0.0
    %1823 = vmatpush2.msra.mxu0 0.0
    %1824 = vmatprep.subr.mxu0 0.0
    %1825 = vmatpush2.msra.mxu0 0.0
    %1826 = vmatprep.subr.mxu0 0.0
    %1827 = vmatpush2.msra.mxu0 0.0
    %1828 = vmatprep.subr.mxu0 0.0
    %1829 = vmatpush2.msra.mxu0 0.0
    %1830 = vmatprep.subr.mxu0 0.0
    %1831 = vmatpush2.msra.mxu0 0.0
    %1832 = vmatprep.mubr.f32.mxu0 0.0
    %1833 = vmatmul.mubr.f32.gmra.mxu0 %v1763
    %v1834 = vpop.f32.mrf.mxu0
    %v1835 = vadd.f32 0.0, %v1834
    %v1836 = vpop.f32.mrf.mxu0
    %1837 = vmatprep.mubr.f32.mxu0 0.0
    %1838 = vmatmul.mubr.f32.gmra.mxu0 %v1766
    %v1839 = vpop.f32.mrf.mxu0
    %v1840 = vadd.f32 0.0, %v1839
    %v1841 = vpop.f32.mrf.mxu0
    %1842 = vdwg.mxu0
    %v1843 = vadd.f32 %v1427, %v1835
    %v1844 = vadd.f32 %v1428, %v1840
    %v1845 = vadd.f32 %v42, %v1843
    %v1846 = vadd.f32 %v43, %v1844
    %v1847 = vld [vmem:[%s5] sm:$0x1]
    %v1849 = vlaneseq
    %v1850 = vshrl.u32 %v1849, 7
    %v1851 = vsub.s32 0, %v1850
    %v1852 = vrot.slane %v1847, %v1851
    %v1854 = vadd.f32 %v1845, %v1852
    %v1855 = vadd.f32 %v1846, %v1852
    %v1856 = vld [vmem:[%s6] sm:$0x1]
    %v1857 = vld [vmem:[%s7] sm:$0x1]
    %v1858 = vsel %vm46, %v1854, 0.0
    %1859 = vadd.xlane.f32.xlu0 %v1858
    %v1860 = vpop.xlane.xlu0 %1859
    %v1861 = vsel %vm46, %v1855, 0.0
    %1862 = vadd.xlane.f32.xlu0 %v1861
    %v1863 = vpop.xlane.xlu0 %1862
    %v1864 = vmul.f32 %v1860, %v53
    %v1865 = vmul.f32 %v1863, %v53
    %v1866 = vsub.f32 %v1854, %v1864
    %v1867 = vsub.f32 %v1855, %v1865
    %v1868 = vmul.f32 %v1866, %v1866
    %v1869 = vmul.f32 %v1867, %v1867
    %v1870 = vsel %vm46, %v1868, 0.0
    %1871 = vadd.xlane.f32.xlu0 %v1870
    %v1872 = vpop.xlane.xlu0 %1871
    %v1873 = vsel %vm46, %v1869, 0.0
    %1874 = vadd.xlane.f32.xlu0 %v1873
    %v1875 = vpop.xlane.xlu0 %1874
    %v1876 = vmul.f32 %v1872, %v53
    %v1877 = vmul.f32 %v1875, %v53
    %v1878 = vadd.f32 %v1876, 1e-05
    %v1879 = vadd.f32 %v1877, 1e-05
    %v1880 = vrsqrt.pop %v1878
    %v1881 = vrsqrt.pop %v1879
    %v1882 = vmul.f32 %v1866, %v1880
    %v1883 = vmul.f32 %v1867, %v1881
    %v1885 = vlaneseq
    %v1886 = vshrl.u32 %v1885, 7
    %v1887 = vsub.s32 0, %v1886
    %v1888 = vrot.slane %v1856, %v1887
    %v1890 = vmul.f32 %v1882, %v1888
    %v1891 = vmul.f32 %v1883, %v1888
    %v1893 = vlaneseq
    %v1894 = vshrl.u32 %v1893, 7
    %v1895 = vsub.s32 0, %v1894
    %v1896 = vrot.slane %v1857, %v1895
    %v1898 = vadd.f32 %v1890, %v1896
    %v1899 = vadd.f32 %v1891, %v1896
    %v1900 = vld [vmem:[%s8] sm:$0xff]
    %v1901 = vld [vmem:[%s8 + $0x8] sm:$0xff]
    %v1902 = vld [vmem:[%s8 + $0x10] sm:$0xff]
    %v1903 = vld [vmem:[%s8 + $0x18] sm:$0xff]
    %v1904 = vld [vmem:[%s9] sm:$0x1]
    %v1906 = vlaneseq
    %v1907 = vshrl.u32 %v1906, 7
    %v1908 = vsub.s32 0, %v1907
    %v1909 = vrot.slane %v1904, %v1908
    %v1912 = vsel %vm46, %v1898, 0
    %v1915 = vsel %vm46, %v1899, 0
    %1917 = vmatprep.subr.mxu0 0.0
    %1918 = vmatpush1.msra.mxu0 0.0
    %1919 = vmatprep.subr.mxu0 0.0
    %1920 = vmatpush1.msra.mxu0 0.0
    %1921 = vmatprep.subr.mxu0 0.0
    %1922 = vmatpush1.msra.mxu0 0.0
    %1923 = vmatprep.subr.mxu0 0.0
    %1924 = vmatpush1.msra.mxu0 0.0
    %1925 = vmatprep.subr.mxu0 0.0
    %1926 = vmatpush1.msra.mxu0 0.0
    %1927 = vmatprep.subr.mxu0 0.0
    %1928 = vmatpush1.msra.mxu0 0.0
    %1929 = vmatprep.subr.mxu0 0.0
    %1930 = vmatpush1.msra.mxu0 0.0
    %1931 = vmatprep.subr.mxu0 0.0
    %1932 = vmatpush1.msra.mxu0 0.0
    %1933 = vmatprep.subr.mxu0 0.0
    %1934 = vmatpush1.msra.mxu0 0.0
    %1935 = vmatprep.subr.mxu0 0.0
    %1936 = vmatpush1.msra.mxu0 0.0
    %1937 = vmatprep.subr.mxu0 0.0
    %1938 = vmatpush1.msra.mxu0 0.0
    %1939 = vmatprep.subr.mxu0 0.0
    %1940 = vmatpush1.msra.mxu0 0.0
    %1941 = vmatprep.subr.mxu0 0.0
    %1942 = vmatpush1.msra.mxu0 %v1903
    %1943 = vmatprep.subr.mxu0 0.0
    %1944 = vmatpush1.msra.mxu0 %v1902
    %1945 = vmatprep.subr.mxu0 0.0
    %1946 = vmatpush1.msra.mxu0 %v1901
    %1947 = vmatprep.subr.mxu0 0.0
    %1948 = vmatpush1.msra.mxu0 %v1900
    %1949 = vmatprep.subr.mxu0 0.0
    %1950 = vmatpush2.msra.mxu0 0.0
    %1951 = vmatprep.subr.mxu0 0.0
    %1952 = vmatpush2.msra.mxu0 0.0
    %1953 = vmatprep.subr.mxu0 0.0
    %1954 = vmatpush2.msra.mxu0 0.0
    %1955 = vmatprep.subr.mxu0 0.0
    %1956 = vmatpush2.msra.mxu0 0.0
    %1957 = vmatprep.subr.mxu0 0.0
    %1958 = vmatpush2.msra.mxu0 0.0
    %1959 = vmatprep.subr.mxu0 0.0
    %1960 = vmatpush2.msra.mxu0 0.0
    %1961 = vmatprep.subr.mxu0 0.0
    %1962 = vmatpush2.msra.mxu0 0.0
    %1963 = vmatprep.subr.mxu0 0.0
    %1964 = vmatpush2.msra.mxu0 0.0
    %1965 = vmatprep.subr.mxu0 0.0
    %1966 = vmatpush2.msra.mxu0 0.0
    %1967 = vmatprep.subr.mxu0 0.0
    %1968 = vmatpush2.msra.mxu0 0.0
    %1969 = vmatprep.subr.mxu0 0.0
    %1970 = vmatpush2.msra.mxu0 0.0
    %1971 = vmatprep.subr.mxu0 0.0
    %1972 = vmatpush2.msra.mxu0 0.0
    %1973 = vmatprep.subr.mxu0 0.0
    %1974 = vmatpush2.msra.mxu0 0.0
    %1975 = vmatprep.subr.mxu0 0.0
    %1976 = vmatpush2.msra.mxu0 0.0
    %1977 = vmatprep.subr.mxu0 0.0
    %1978 = vmatpush2.msra.mxu0 0.0
    %1979 = vmatprep.subr.mxu0 0.0
    %1980 = vmatpush2.msra.mxu0 0.0
    %1981 = vmatprep.mubr.f32.mxu0 0.0
    %1982 = vmatmul.mubr.f32.gmra.mxu0 %v1912
    %v1983 = vpop.f32.mrf.mxu0
    %v1984 = vadd.f32 %v1909, %v1983
    %v1985 = vpop.f32.mrf.mxu0
    %1986 = vmatprep.mubr.f32.mxu0 0.0
    %1987 = vmatmul.mubr.f32.gmra.mxu0 %v1915
    %v1988 = vpop.f32.mrf.mxu0
    %v1989 = vadd.f32 %v1909, %v1988
    %v1990 = vpop.f32.mrf.mxu0
    %1991 = vdwg.mxu0
    %v1992 = vmul.f32 %v1984, 0.5
    %v1993 = vmul.f32 %v1989, 0.5
    %v1994 = vmul.f32 %v1984, 0.70710677
    %v1995 = vmul.f32 %v1989, 0.70710677
    %v1996 = verf.f32.pop %v1994
    %v1997 = verf.f32.pop %v1995
    %v1998 = vadd.f32 %v1996, 1.0
    %v1999 = vadd.f32 %v1997, 1.0
    %v2000 = vmul.f32 %v1992, %v1998
    %v2001 = vmul.f32 %v1993, %v1999
    %v2002 = vld [vmem:[%s10] sm:$0xff]
    %v2003 = vld [vmem:[%s10 + $0x8] sm:$0xff]
    %v2004 = vld [vmem:[%s10 + $0x10] sm:$0xff]
    %v2005 = vld [vmem:[%s10 + $0x18] sm:$0xff]
    %v2006 = vld [vmem:[%s10 + $0x20] sm:$0xff]
    %v2007 = vld [vmem:[%s10 + $0x28] sm:$0xff]
    %v2008 = vld [vmem:[%s10 + $0x30] sm:$0xff]
    %v2009 = vld [vmem:[%s10 + $0x38] sm:$0xff]
    %v2010 = vld [vmem:[%s10 + $0x40] sm:$0xff]
    %v2011 = vld [vmem:[%s10 + $0x48] sm:$0xff]
    %v2012 = vld [vmem:[%s10 + $0x50] sm:$0xff]
    %v2013 = vld [vmem:[%s10 + $0x58] sm:$0xff]
    %v2014 = vld [vmem:[%s10 + $0x60] sm:$0xff]
    %v2015 = vld [vmem:[%s10 + $0x68] sm:$0xff]
    %v2016 = vld [vmem:[%s10 + $0x70] sm:$0xff]
    %v2017 = vld [vmem:[%s10 + $0x78] sm:$0xff]
    %v2018 = vld [vmem:[%s11] sm:$0x1]
    %v2020 = vlaneseq
    %v2021 = vshrl.u32 %v2020, 7
    %v2022 = vsub.s32 0, %v2021
    %v2023 = vrot.slane %v2018, %v2022
    %2025 = vmatprep.subr.mxu0 0.0
    %2026 = vmatpush1.msra.mxu0 %v2017
    %2027 = vmatprep.subr.mxu0 0.0
    %2028 = vmatpush1.msra.mxu0 %v2016
    %2029 = vmatprep.subr.mxu0 0.0
    %2030 = vmatpush1.msra.mxu0 %v2015
    %2031 = vmatprep.subr.mxu0 0.0
    %2032 = vmatpush1.msra.mxu0 %v2014
    %2033 = vmatprep.subr.mxu0 0.0
    %2034 = vmatpush1.msra.mxu0 %v2013
    %2035 = vmatprep.subr.mxu0 0.0
    %2036 = vmatpush1.msra.mxu0 %v2012
    %2037 = vmatprep.subr.mxu0 0.0
    %2038 = vmatpush1.msra.mxu0 %v2011
    %2039 = vmatprep.subr.mxu0 0.0
    %2040 = vmatpush1.msra.mxu0 %v2010
    %2041 = vmatprep.subr.mxu0 0.0
    %2042 = vmatpush1.msra.mxu0 %v2009
    %2043 = vmatprep.subr.mxu0 0.0
    %2044 = vmatpush1.msra.mxu0 %v2008
    %2045 = vmatprep.subr.mxu0 0.0
    %2046 = vmatpush1.msra.mxu0 %v2007
    %2047 = vmatprep.subr.mxu0 0.0
    %2048 = vmatpush1.msra.mxu0 %v2006
    %2049 = vmatprep.subr.mxu0 0.0
    %2050 = vmatpush1.msra.mxu0 %v2005
    %2051 = vmatprep.subr.mxu0 0.0
    %2052 = vmatpush1.msra.mxu0 %v2004
    %2053 = vmatprep.subr.mxu0 0.0
    %2054 = vmatpush1.msra.mxu0 %v2003
    %2055 = vmatprep.subr.mxu0 0.0
    %2056 = vmatpush1.msra.mxu0 %v2002
    %2057 = vmatprep.subr.mxu0 0.0
    %2058 = vmatpush2.msra.mxu0 0.0
    %2059 = vmatprep.subr.mxu0 0.0
    %2060 = vmatpush2.msra.mxu0 0.0
    %2061 = vmatprep.subr.mxu0 0.0
    %2062 = vmatpush2.msra.mxu0 0.0
    %2063 = vmatprep.subr.mxu0 0.0
    %2064 = vmatpush2.msra.mxu0 0.0
    %2065 = vmatprep.subr.mxu0 0.0
    %2066 = vmatpush2.msra.mxu0 0.0
    %2067 = vmatprep.subr.mxu0 0.0
    %2068 = vmatpush2.msra.mxu0 0.0
    %2069 = vmatprep.subr.mxu0 0.0
    %2070 = vmatpush2.msra.mxu0 0.0
    %2071 = vmatprep.subr.mxu0 0.0
    %2072 = vmatpush2.msra.mxu0 0.0
    %2073 = vmatprep.subr.mxu0 0.0
    %2074 = vmatpush2.msra.mxu0 0.0
    %2075 = vmatprep.subr.mxu0 0.0
    %2076 = vmatpush2.msra.mxu0 0.0
    %2077 = vmatprep.subr.mxu0 0.0
    %2078 = vmatpush2.msra.mxu0 0.0
    %2079 = vmatprep.subr.mxu0 0.0
    %2080 = vmatpush2.msra.mxu0 0.0
    %2081 = vmatprep.subr.mxu0 0.0
    %2082 = vmatpush2.msra.mxu0 0.0
    %2083 = vmatprep.subr.mxu0 0.0
    %2084 = vmatpush2.msra.mxu0 0.0
    %2085 = vmatprep.subr.mxu0 0.0
    %2086 = vmatpush2.msra.mxu0 0.0
    %2087 = vmatprep.subr.mxu0 0.0
    %2088 = vmatpush2.msra.mxu0 0.0
    %2089 = vmatprep.mubr.f32.mxu0 0.0
    %2090 = vmatmul.mubr.f32.gmra.mxu0 %v2000
    %v2091 = vpop.f32.mrf.mxu0
    %v2092 = vadd.f32 %v2023, %v2091
    %v2093 = vpop.f32.mrf.mxu0
    %2094 = vmatprep.mubr.f32.mxu0 0.0
    %2095 = vmatmul.mubr.f32.gmra.mxu0 %v2001
    %v2096 = vpop.f32.mrf.mxu0
    %v2097 = vadd.f32 %v2023, %v2096
    %v2098 = vpop.f32.mrf.mxu0
    %2099 = vdwg.mxu0
    %v2100 = vadd.f32 %v1854, %v2092
    %v2101 = vadd.f32 %v1855, %v2097
    %2102 = vst.msk [vmem:[#allocation2] sm:$0xff] %vm46, %v2100
    %2103 = vst.msk [vmem:[#allocation2 + $0x8] sm:$0xff] %vm46, %v2101
    // Predicated region
    $region50: #{tpu_custom_call.1} parent=1 // pred_check
      _
    $region51: #{tpu_custom_call.1} parent=1 // pred_check_branch
      %2105 = sbr.rel (0) target = $region53
    $region52: #{tpu_custom_call.1} parent=1 // pred_region
      %s2107 = ssub.s32 256, 256
      %2108 = vsyncadd [#allocation3], %s2107
      %s2109 = sshll.u32 [#allocation2], 4
      %s2110 = int_to_ptr.vmem [resolvable:$true] %s2109
      %2115 = dma.vmem_to_hbm [thread:$0]  %s2110, 256, %s12, [#allocation3], 128, 128, 8
    $region53: #{tpu_custom_call.1} parent=1 // pred_fallthru
      _
    // Predicated region
    $region54: #{tpu_custom_call.1} parent=1 // pred_check
      _
    $region55: #{tpu_custom_call.1} parent=1 // pred_check_branch
      %2117 = sbr.rel (0) target = $region57
    $region56: #{tpu_custom_call.1} parent=1 // pred_region
      %2118 = dma.done [#allocation3], 256
    $region57: #{tpu_custom_call.1} parent=1 // pred_fallthru
      _
    %2119 = vsyncpa [#allocation3], 1

</llo_original>
